<compile_context>
chip_gen: v5e
topology: v5e:2x2
jax: 0.10.0
libtpu: 0.0.40
codegen_flags: <defaults>
</compile_context>

<pallas_src>
import functools
import numpy as np
import jax
import jax.numpy as jnp
from jax.experimental import pallas as pl
from jax.experimental.pallas import tpu as pltpu

_PI = np.float32(np.pi)


def _round8(x: int) -> int:
    return (x + 7) // 8 * 8


# ----------------------------- Pallas kernel -------------------------------

def dvf_kernel(data_ref, w_ref, out_ref, *, sa, ha, ca, cdim):
    """Feature-major forward pass.

    data_ref: [sa+1, BN]  rows 0..S-1: state^T (rows replicated per quantile),
              row S: constant 1 (homogeneous bias feature), zero pad to sa,
              row sa: tau (flattened quantile levels).
    w_ref:    [4*ha+8, lw] augmented weights [W | b] stacked on the sublane
              axis at 8-aligned offsets; each block carries a pass-through row
              so biases ride the MXU (no separate bias adds / broadcasts).
    out_ref:  [8, BN]  row 0 holds q; one full (8,128)-tile lane-dense store.
    """
    f32 = jnp.float32

    x0 = data_ref[0:sa, :]                        # [SA, BN] state^T | 1 | 0-pad
    tau = data_ref[sa:sa + 1, :]                  # [1, BN]
    bn = tau.shape[-1]

    w1a = w_ref[0:ha, 0:sa]                       # trunk layer 1   [HA, SA]
    w2a = w_ref[ha:2 * ha, 0:ha]                  # trunk layer 2   [HA, HA]
    wta = w_ref[2 * ha:3 * ha, 0:ca]              # v_tau           [HA, CA]
    wv1a = w_ref[3 * ha:4 * ha, 0:ha]             # v_val layer 1   [HA, HA]
    wv2a = w_ref[4 * ha:4 * ha + 8, 0:ha]         # v_val layer 2   [8, HA] (row 0 live)

    # --- v_trunk: Linear -> ReLU -> Linear (biases folded into the matmuls) ---
    h = jnp.maximum(jnp.dot(w1a, x0, preferred_element_type=f32), 0.0)   # [HA, BN]
    v = jnp.dot(w2a, h, preferred_element_type=f32)                      # [HA, BN]

    # --- cosine embedding, lane-dense: ang[k,:] = (k+1)*pi*tau for k < C ---
    k = jax.lax.broadcasted_iota(jnp.int32, (ca, bn), 0)
    scale = jnp.where(k < cdim, (k.astype(f32) + 1.0) * _PI, 0.0)        # [CA, BN]
    cosines = jnp.cos(scale * tau)                                       # [CA, BN]; row C = cos(0) = 1 feeds v_tau's bias column

    # --- v_tau: Linear(C,H) -> ReLU (output activation) ---
    phi = jnp.maximum(jnp.dot(wta, cosines, preferred_element_type=f32), 0.0)  # [HA, BN]

    # --- multiply by trunk features: plain full-lane vreg multiply ---
    x = phi * v                                                          # [HA, BN]; row H stays 1 (carries v_val biases)

    # --- v_val: Linear(H,H) -> ReLU -> Linear(H,1) ---
    h1 = jnp.maximum(jnp.dot(wv1a, x, preferred_element_type=f32), 0.0)  # [HA, BN]
    out_ref[...] = jnp.dot(wv2a, h1, preferred_element_type=f32)         # [8, BN], row 0 = q


# ------------------------- wrapper-side parameter packing -------------------

def pack_weights(p, state_dim, hidden_dim, cosines_dim):
    """Pack every Linear's weight+bias into one sublane-stacked VMEM slab.

    Each layer becomes an augmented block [W[out,in] | b] with a pass-through
    row that forwards the constant-1 feature, zero-padded so every block starts
    on an 8-aligned sublane offset (tile-aligned static slices in the kernel).
    """
    S, H, C = state_dim, hidden_dim, cosines_dim
    sa, ha, ca = _round8(S + 1), _round8(H + 1), _round8(C + 1)
    lw = max(sa, ha, ca)

    def aug(w_in_out, b_row, in_dim):
        blk = np.zeros((ha, lw), np.float32)
        blk[:H, :in_dim] = np.asarray(w_in_out).T          # [out, in]
        blk[:H, in_dim] = np.asarray(b_row).reshape(-1)    # bias column
        blk[H, in_dim] = 1.0                               # pass-through of the constant-1 feature
        return blk

    w1a = aug(p['w1'], p['b1'], S)
    w2a = aug(p['w2'], p['b2'], H)
    wta = aug(p['wt'], p['bt'], C)
    wv1a = aug(p['wv1'], p['bv1'], H)
    wv2a = np.zeros((8, lw), np.float32)                   # final layer: no pass-through
    wv2a[0, :H] = np.asarray(p['wv2']).reshape(-1)
    wv2a[0, H] = float(np.asarray(p['bv2']).reshape(()))

    slab = np.concatenate([w1a, w2a, wta, wv1a, wv2a], axis=0)   # [4*ha+8, lw]
    return jnp.asarray(slab), (sa, ha, ca)


# --------------------------------- wrapper ----------------------------------

def dvf_forward(state, tau, params):
    """state: [B, S] f32, tau: [B, N] f32 -> [B, N] f32."""
    B, S = state.shape
    _, N = tau.shape
    BN = B * N
    H = params['w2'].shape[1]
    C = params['wt'].shape[0]

    w_slab, (sa, ha, ca) = pack_weights(params, S, H, C)

    # Data slab: state^T with rows replicated per quantile, a constant-1 row
    # (homogeneous bias feature), zero pad to the 8-aligned trunk input width,
    # then the flattened tau row.  Single DMA, BN on the lane axis throughout.
    stateT = jnp.repeat(state, N, axis=0).T                        # [S, BN]
    ones = jnp.ones((1, BN), jnp.float32)
    pad = jnp.zeros((sa - S - 1, BN), jnp.float32)
    tau_row = tau.reshape(1, BN)
    data = jnp.concatenate([stateT, ones, pad, tau_row], axis=0)   # [sa+1, BN]

    flops = 2 * BN * (sa * ha + ha * ha + ca * ha + ha * ha + ha * 8)
    bytes_accessed = 4 * (data.size + w_slab.size + 8 * BN)
    vmem = pl.BlockSpec(memory_space=pltpu.MemorySpace.VMEM)

    out = pl.pallas_call(
        functools.partial(dvf_kernel, sa=sa, ha=ha, ca=ca, cdim=C),
        out_shape=jax.ShapeDtypeStruct((8, BN), jnp.float32),      # lane-dense, one vreg tile
        in_specs=[vmem, vmem],
        out_specs=vmem,
        cost_estimate=pl.CostEstimate(flops=flops,
                                      transcendentals=ca * BN,
                                      bytes_accessed=bytes_accessed),
    )(data, w_slab)
    # TODO(synk): for large B*N add a 1-D grid over the lane (row) axis with a
    # constant index_map for the weight slab and dimension_semantics=("parallel",)
    # so v7x can shard rows across both TensorCores; pointless at B*N = 128.
    return out[0].reshape(B, N)


# --------------------------- pure-JAX reference -----------------------------

def dvf_reference(state, tau, p):
    h = jnp.maximum(state @ p['w1'] + p['b1'], 0.0)
    v = h @ p['w2'] + p['b2']                               # [B, H]
    cosines = jnp.cos(tau[:, :, None] * p['range_pi'])      # [B, N, C]
    phi = jnp.maximum(jnp.einsum('bnc,ch->bnh', cosines, p['wt']) + p['bt'], 0.0)
    x = phi * v[:, None, :]
    h1 = jnp.maximum(jnp.einsum('bnh,hk->bnk', x, p['wv1']) + p['bv1'], 0.0)
    q = jnp.einsum('bnh,ho->bno', h1, p['wv2']) + p['bv2']
    return q[..., 0]


# --------------------------------- main --------------------------------------

if __name__ == "__main__":
    # Small, module-consistent shapes.
    B = 8            # batch
    N = 16           # num_quantiles   (B*N = 128 -> full lane fill)
    S = 32           # state_dim
    H = 32           # hidden_dim
    C = 64           # cosines_dim
    # TODO(synk): v_val depth is fixed to l=2 here; a generic l would add more
    # augmented blocks to the weight slab and loop the Linear+ReLU pair.

    key = jax.random.PRNGKey(0)
    ks = jax.random.split(key, 16)

    def u(k, shape, scale=0.1):
        return jax.random.uniform(k, shape, jnp.float32, -scale, scale)

    params = {
        # v_trunk (weights stored [in, out], biases [1, out])
        'w1': u(ks[0], (S, H)), 'b1': u(ks[1], (1, H)),
        'w2': u(ks[2], (H, H)), 'b2': u(ks[3], (1, H)),
        # v_tau
        'wt': u(ks[4], (C, H)), 'bt': u(ks[5], (1, H)),
        # v_val (edac_init puts the last layer in [-0.003, 0.003])
        'wv1': u(ks[6], (H, H)), 'bv1': u(ks[7], (1, H)),
        'wv2': u(ks[8], (H, 1), scale=0.003), 'bv2': u(ks[9], (1, 1), scale=0.003),
        # reference-only: range_pi = arange(1..C) * pi
        'range_pi': (jnp.arange(1, C + 1, dtype=jnp.float32) * np.pi)[None, :],
    }

    state = jax.random.normal(ks[10], (B, S), jnp.float32)
    tau = jax.random.uniform(ks[11], (B, N), jnp.float32)   # quantile levels in [0,1)

    out = dvf_forward(state, tau, params)
    out = jax.block_until_ready(out)

    ref = dvf_reference(state, tau, params)
    assert out.shape == (B, N), out.shape
    assert jnp.allclose(out, ref, rtol=1e-4, atol=1e-5), \
        f"max abs err = {jnp.max(jnp.abs(out - ref))}"

    print("KERNEL_OK")
</pallas_src>

<mosaic_0001>
module attributes {stable_mosaic.version = 11 : i64} {
  func.func @dvf_kernel(%arg0: memref<41x128xf32, #tpu.memory_space<vmem>>, %arg1: memref<168x72xf32, #tpu.memory_space<vmem>>, %arg2: memref<8x128xf32, #tpu.memory_space<vmem>>) attributes {dimension_semantics = [], scalar_prefetch = 0 : i64, scratch_operands = 0 : i64, tpu.core_type = #tpu.core_type<tc>} {
    %c0 = arith.constant 0 : index
    %c0_0 = arith.constant 0 : index
    %0 = vector.load %arg0[%c0, %c0_0] : memref<41x128xf32, #tpu.memory_space<vmem>>, vector<40x128xf32>
    %c40 = arith.constant 40 : index
    %c0_1 = arith.constant 0 : index
    %1 = vector.load %arg0[%c40, %c0_1] : memref<41x128xf32, #tpu.memory_space<vmem>>, vector<1x128xf32>
    %c0_2 = arith.constant 0 : index
    %c0_3 = arith.constant 0 : index
    %2 = vector.load %arg1[%c0_2, %c0_3] : memref<168x72xf32, #tpu.memory_space<vmem>>, vector<40x40xf32>
    %c40_4 = arith.constant 40 : index
    %c0_5 = arith.constant 0 : index
    %3 = vector.load %arg1[%c40_4, %c0_5] : memref<168x72xf32, #tpu.memory_space<vmem>>, vector<40x40xf32>
    %c80 = arith.constant 80 : index
    %c0_6 = arith.constant 0 : index
    %4 = vector.load %arg1[%c80, %c0_6] : memref<168x72xf32, #tpu.memory_space<vmem>>, vector<40x72xf32>
    %c120 = arith.constant 120 : index
    %c0_7 = arith.constant 0 : index
    %5 = vector.load %arg1[%c120, %c0_7] : memref<168x72xf32, #tpu.memory_space<vmem>>, vector<40x40xf32>
    %c160 = arith.constant 160 : index
    %c0_8 = arith.constant 0 : index
    %6 = vector.load %arg1[%c160, %c0_8] : memref<168x72xf32, #tpu.memory_space<vmem>>, vector<8x40xf32>
    %cst = arith.constant dense<0.000000e+00> : vector<40x128xf32>
    %7 = tpu.matmul %2, %0, %cst {dimension_numbers = #tpu.dot_dimension_numbers<[1], [0], [0], [1], [0, 0, 1, 1], [], []>} : vector<40x40xf32>, vector<40x128xf32>, vector<40x128xf32> -> vector<40x128xf32>
    %cst_9 = arith.constant 0.000000e+00 : f32
    %8 = vector.broadcast %cst_9 : f32 to vector<40x128xf32>
    %9 = arith.maximumf %7, %8 : vector<40x128xf32>
    %cst_10 = arith.constant dense<0.000000e+00> : vector<40x128xf32>
    %10 = tpu.matmul %3, %9, %cst_10 {dimension_numbers = #tpu.dot_dimension_numbers<[1], [0], [0], [1], [0, 0, 1, 1], [], []>} : vector<40x40xf32>, vector<40x128xf32>, vector<40x128xf32> -> vector<40x128xf32>
    %11 = tpu.iota {dimensions = array<i32: 0>} : vector<72x128xi32>
    %c64_i32 = arith.constant 64 : i32
    %12 = vector.broadcast %c64_i32 : i32 to vector<72x128xi32>
    %13 = arith.cmpi slt, %11, %12 : vector<72x128xi32>
    %14 = arith.sitofp %11 : vector<72x128xi32> to vector<72x128xf32>
    %cst_11 = arith.constant 1.000000e+00 : f32
    %15 = vector.broadcast %cst_11 : f32 to vector<72x128xf32>
    %16 = arith.addf %14, %15 : vector<72x128xf32>
    %cst_12 = arith.constant 3.14159274 : f32
    %17 = vector.broadcast %cst_12 : f32 to vector<72x128xf32>
    %18 = arith.mulf %16, %17 : vector<72x128xf32>
    %cst_13 = arith.constant 0.000000e+00 : f32
    %19 = vector.broadcast %cst_13 : f32 to vector<72x128xf32>
    %20 = arith.select %13, %18, %19 : vector<72x128xi1>, vector<72x128xf32>
    %21 = vector.broadcast %1 : vector<1x128xf32> to vector<72x128xf32>
    %22 = arith.mulf %20, %21 : vector<72x128xf32>
    %23 = math.cos %22 : vector<72x128xf32>
    %cst_14 = arith.constant dense<0.000000e+00> : vector<40x128xf32>
    %24 = tpu.matmul %4, %23, %cst_14 {dimension_numbers = #tpu.dot_dimension_numbers<[1], [0], [0], [1], [0, 0, 1, 1], [], []>} : vector<40x72xf32>, vector<72x128xf32>, vector<40x128xf32> -> vector<40x128xf32>
    %cst_15 = arith.constant 0.000000e+00 : f32
    %25 = vector.broadcast %cst_15 : f32 to vector<40x128xf32>
    %26 = arith.maximumf %24, %25 : vector<40x128xf32>
    %27 = arith.mulf %26, %10 : vector<40x128xf32>
    %cst_16 = arith.constant dense<0.000000e+00> : vector<40x128xf32>
    %28 = tpu.matmul %5, %27, %cst_16 {dimension_numbers = #tpu.dot_dimension_numbers<[1], [0], [0], [1], [0, 0, 1, 1], [], []>} : vector<40x40xf32>, vector<40x128xf32>, vector<40x128xf32> -> vector<40x128xf32>
    %cst_17 = arith.constant 0.000000e+00 : f32
    %29 = vector.broadcast %cst_17 : f32 to vector<40x128xf32>
    %30 = arith.maximumf %28, %29 : vector<40x128xf32>
    %cst_18 = arith.constant dense<0.000000e+00> : vector<8x128xf32>
    %31 = tpu.matmul %6, %30, %cst_18 {dimension_numbers = #tpu.dot_dimension_numbers<[1], [0], [0], [1], [0, 0, 1, 1], [], []>} : vector<8x40xf32>, vector<40x128xf32>, vector<8x128xf32> -> vector<8x128xf32>
    %c0_19 = arith.constant 0 : index
    %c0_20 = arith.constant 0 : index
    %32 = vector.load %arg2[%c0_19, %c0_20] : memref<8x128xf32, #tpu.memory_space<vmem>>, vector<8x128xf32>
    tpu.vector_store %arg2[%c0_19, %c0_20], %31 {strides = array<i32>} : memref<8x128xf32, #tpu.memory_space<vmem>>, vector<8x128xf32>,
    return
  }
}

</mosaic_0001>

<llo_original>
// kernel: tpu_custom_call.1
$region0: #{tpu_custom_call.1}
  #allocation0 [shape = 'u32[]', space=smem, size = 0x4, offset = 0x4, fixed_abs, tag = 'smem constant byte address 0x4 - core index']
  #allocation1 [shape = 'u32[72,128]{1,0:T(1,128)}', space=vmem, size = 0x9000, scoped, tag = 'internal scratch']
  %s0 = inlined_call_operand.vmem [shape: f32[41,128], index: 0, kind: input, shape index: {}]
  %s1 = inlined_call_operand.vmem [shape: f32[168,72], index: 1, kind: input, shape index: {}]
  %s2 = inlined_call_operand.hbm [shape: f32[8,128], index: 2, kind: output, shape index: {}]
  %s3 = sld [smem:[#allocation0]]
  $region18: #{tpu_custom_call.1} parent=0
    _
  %s5 = ssub.s32 1, %s3
  %s6 = scalar_select 0, %s5, %s3
  $region1: #{tpu_custom_call.1} parent=0
    #allocation2 [shape = 'u8[4096]{0}', space=vmem, size = 0x1000, scoped, tag = 'output window, operand 0, single buffered']
    #allocation3 [shape = 's32[1]{0}', space=sflag, size = 0x4, scoped, tag = 'scoped memory for tpu_custom_call.1']
    %7 = vsyncpa [#allocation3], 0
    // Predicated region
    $region2: #{tpu_custom_call.1} parent=1 // pred_check
      _
    $region3: #{tpu_custom_call.1} parent=1 // pred_check_branch
      %9 = sbr.rel (0) target = $region5
    $region4: #{tpu_custom_call.1} parent=1 // pred_region
      _
    $region5: #{tpu_custom_call.1} parent=1 // pred_fallthru
      _
    // Predicated region
    $region6: #{tpu_custom_call.1} parent=1 // pred_check
      _
    $region7: #{tpu_custom_call.1} parent=1 // pred_check_branch
      %11 = sbr.rel (0) target = $region9
    $region8: #{tpu_custom_call.1} parent=1 // pred_region
      _
    $region9: #{tpu_custom_call.1} parent=1 // pred_fallthru
      _
    %v12 = vld [vmem:[%s0] sm:$0xff]
    %v13 = vld [vmem:[%s0 + $0x8] sm:$0xff]
    %v14 = vld [vmem:[%s0 + $0x10] sm:$0xff]
    %v15 = vld [vmem:[%s0 + $0x18] sm:$0xff]
    %v16 = vld [vmem:[%s0 + $0x20] sm:$0xff]
    %v17 = vld [vmem:[%s0 + $0x28] sm:$0x1]
    %v18 = vld [vmem:[%s1] sm:$0xff]
    %v19 = vld [vmem:[%s1 + $0x8] sm:$0xff]
    %v20 = vld [vmem:[%s1 + $0x10] sm:$0xff]
    %v21 = vld [vmem:[%s1 + $0x18] sm:$0xff]
    %v22 = vld [vmem:[%s1 + $0x20] sm:$0xff]
    %v23 = vld [vmem:[%s1 + $0x28] sm:$0xff]
    %v24 = vld [vmem:[%s1 + $0x30] sm:$0xff]
    %v25 = vld [vmem:[%s1 + $0x38] sm:$0xff]
    %v26 = vld [vmem:[%s1 + $0x40] sm:$0xff]
    %v27 = vld [vmem:[%s1 + $0x48] sm:$0xff]
    %v28 = vld [vmem:[%s1 + $0x50] sm:$0xff]
    %v29 = vld [vmem:[%s1 + $0x58] sm:$0xff]
    %v30 = vld [vmem:[%s1 + $0x60] sm:$0xff]
    %v31 = vld [vmem:[%s1 + $0x68] sm:$0xff]
    %v32 = vld [vmem:[%s1 + $0x70] sm:$0xff]
    %v33 = vld [vmem:[%s1 + $0x78] sm:$0xff]
    %v34 = vld [vmem:[%s1 + $0x80] sm:$0xff]
    %v35 = vld [vmem:[%s1 + $0x88] sm:$0xff]
    %v36 = vld [vmem:[%s1 + $0x90] sm:$0xff]
    %v37 = vld [vmem:[%s1 + $0x98] sm:$0xff]
    %v38 = vld [vmem:[%s1 + $0xa0] sm:$0xff]
    %vm39 = vcmask 326656
    %v41 = vsel %vm39, %v18, 0
    %v44 = vsel %vm39, %v19, 0
    %v47 = vsel %vm39, %v20, 0
    %v50 = vsel %vm39, %v21, 0
    %v53 = vsel %vm39, %v22, 0
    %55 = vmatpush.msra.mxu0 0.0
    %56 = vmatpush.msra.mxu0 0.0
    %57 = vmatpush.msra.mxu0 0.0
    %58 = vmatpush.msra.mxu0 0.0
    %59 = vmatpush.msra.mxu0 0.0
    %60 = vmatpush.msra.mxu0 0.0
    %61 = vmatpush.msra.mxu0 0.0
    %62 = vmatpush.msra.mxu0 0.0
    %63 = vmatpush.msra.mxu0 0.0
    %64 = vmatpush.msra.mxu0 0.0
    %65 = vmatpush.msra.mxu0 0.0
    %66 = vmatpush.msra.mxu0 %v16
    %67 = vmatpush.msra.mxu0 %v15
    %68 = vmatpush.msra.mxu0 %v14
    %69 = vmatpush.msra.mxu0 %v13
    %70 = vmatpush.msra.mxu0 %v12
    %71 = vmatmul.f32.gmra.mxu0 %v41
    %v72 = vpop.f32.mrf.mxu0
    %v73 = vadd.f32 0.0, %v72
    %74 = vmatmul.f32.gmra.mxu0 %v44
    %v75 = vpop.f32.mrf.mxu0
    %v76 = vadd.f32 0.0, %v75
    %77 = vmatmul.f32.gmra.mxu0 %v47
    %v78 = vpop.f32.mrf.mxu0
    %v79 = vadd.f32 0.0, %v78
    %80 = vmatmul.f32.gmra.mxu0 %v50
    %v81 = vpop.f32.mrf.mxu0
    %v82 = vadd.f32 0.0, %v81
    %83 = vmatmul.f32.gmra.mxu0 %v53
    %v84 = vpop.f32.mrf.mxu0
    %v85 = vadd.f32 0.0, %v84
    %86 = vdwg.mxu0
    %v87 = vmax.f32 %v73, 0.0
    %v88 = vmax.f32 %v76, 0.0
    %v89 = vmax.f32 %v79, 0.0
    %v90 = vmax.f32 %v82, 0.0
    %v91 = vmax.f32 %v85, 0.0
    %v93 = vsel %vm39, %v23, 0
    %v96 = vsel %vm39, %v24, 0
    %v99 = vsel %vm39, %v25, 0
    %v102 = vsel %vm39, %v26, 0
    %v105 = vsel %vm39, %v27, 0
    %107 = vmatpush.msra.mxu0 0.0
    %108 = vmatpush.msra.mxu0 0.0
    %109 = vmatpush.msra.mxu0 0.0
    %110 = vmatpush.msra.mxu0 0.0
    %111 = vmatpush.msra.mxu0 0.0
    %112 = vmatpush.msra.mxu0 0.0
    %113 = vmatpush.msra.mxu0 0.0
    %114 = vmatpush.msra.mxu0 0.0
    %115 = vmatpush.msra.mxu0 0.0
    %116 = vmatpush.msra.mxu0 0.0
    %117 = vmatpush.msra.mxu0 0.0
    %118 = vmatpush.msra.mxu0 %v91
    %119 = vmatpush.msra.mxu0 %v90
    %120 = vmatpush.msra.mxu0 %v89
    %121 = vmatpush.msra.mxu0 %v88
    %122 = vmatpush.msra.mxu0 %v87
    %123 = vmatmul.f32.gmra.mxu0 %v93
    %v124 = vpop.f32.mrf.mxu0
    %v125 = vadd.f32 0.0, %v124
    %126 = vmatmul.f32.gmra.mxu0 %v96
    %v127 = vpop.f32.mrf.mxu0
    %v128 = vadd.f32 0.0, %v127
    %129 = vmatmul.f32.gmra.mxu0 %v99
    %v130 = vpop.f32.mrf.mxu0
    %v131 = vadd.f32 0.0, %v130
    %132 = vmatmul.f32.gmra.mxu0 %v102
    %v133 = vpop.f32.mrf.mxu0
    %v134 = vadd.f32 0.0, %v133
    %135 = vmatmul.f32.gmra.mxu0 %v105
    %v136 = vpop.f32.mrf.mxu0
    %v137 = vadd.f32 0.0, %v136
    %138 = vdwg.mxu0
    %v139 = vlaneseq
    %v140 = vshrl.u32 %v139, 7
    %v141 = vadd.s32 %v140, 8
    %v142 = vadd.s32 %v140, 16
    %v143 = vadd.s32 %v140, 24
    %v144 = vadd.s32 %v140, 32
    %v145 = vadd.s32 %v140, 40
    %v146 = vadd.s32 %v140, 48
    %v147 = vadd.s32 %v140, 56
    %v148 = vadd.s32 %v140, 64
    %vm149 = vcmp.lt.s32.totalorder %v140, 64
    %vm150 = vcmp.lt.s32.totalorder %v141, 64
    %vm151 = vcmp.lt.s32.totalorder %v142, 64
    %vm152 = vcmp.lt.s32.totalorder %v143, 64
    %vm153 = vcmp.lt.s32.totalorder %v144, 64
    %vm154 = vcmp.lt.s32.totalorder %v145, 64
    %vm155 = vcmp.lt.s32.totalorder %v146, 64
    %vm156 = vcmp.lt.s32.totalorder %v147, 64
    %vm157 = vcmp.lt.s32.totalorder %v148, 64
    %v158 = vcvt.s32.f32 %v140
    %v159 = vcvt.s32.f32 %v141
    %v160 = vcvt.s32.f32 %v142
    %v161 = vcvt.s32.f32 %v143
    %v162 = vcvt.s32.f32 %v144
    %v163 = vcvt.s32.f32 %v145
    %v164 = vcvt.s32.f32 %v146
    %v165 = vcvt.s32.f32 %v147
    %v166 = vcvt.s32.f32 %v148
    %v167 = vadd.f32 %v158, 1.0
    %v168 = vadd.f32 %v159, 1.0
    %v169 = vadd.f32 %v160, 1.0
    %v170 = vadd.f32 %v161, 1.0
    %v171 = vadd.f32 %v162, 1.0
    %v172 = vadd.f32 %v163, 1.0
    %v173 = vadd.f32 %v164, 1.0
    %v174 = vadd.f32 %v165, 1.0
    %v175 = vadd.f32 %v166, 1.0
    %v176 = vmul.f32 %v167, 3.1415927
    %v177 = vmul.f32 %v168, 3.1415927
    %v178 = vmul.f32 %v169, 3.1415927
    %v179 = vmul.f32 %v170, 3.1415927
    %v180 = vmul.f32 %v171, 3.1415927
    %v181 = vmul.f32 %v172, 3.1415927
    %v182 = vmul.f32 %v173, 3.1415927
    %v183 = vmul.f32 %v174, 3.1415927
    %v184 = vmul.f32 %v175, 3.1415927
    %v185 = vsel %vm149, %v176, 0.0
    %v186 = vsel %vm150, %v177, 0.0
    %v187 = vsel %vm151, %v178, 0.0
    %v188 = vsel %vm152, %v179, 0.0
    %v189 = vsel %vm153, %v180, 0.0
    %v190 = vsel %vm154, %v181, 0.0
    %v191 = vsel %vm155, %v182, 0.0
    %v192 = vsel %vm156, %v183, 0.0
    %v193 = vsel %vm157, %v184, 0.0
    %v194 = vperm.slane %v17, 0
    %v195 = vmul.f32 %v185, %v194
    %v196 = vmul.f32 %v186, %v194
    %v197 = vmul.f32 %v187, %v194
    %v198 = vmul.f32 %v188, %v194
    %v199 = vmul.f32 %v189, %v194
    %v200 = vmul.f32 %v190, %v194
    %v201 = vmul.f32 %v191, %v194
    %v202 = vmul.f32 %v192, %v194
    %v203 = vmul.f32 %v193, %v194
    %v204 = vand.u32 2147483647, %v195
    %vm205 = vcmp.le.f32.partialorder %v204, 0.7853982
    %vm206 = vcmp.lt.s32.totalorder %v195, 0
    %v207 = vand.u32 %v195, 2139095040
    %v208 = vshrl.u32 %v207, 23
    %v209 = vsub.s32 %v208, 127
    %v210 = vand.u32 2147483647, %v195
    %v211 = vand.u32 %v210, 8388607
    %v212 = vor.u32 %v211, 8388608
    %v213 = vsub.s32 0, %v212
    %v214 = vadd.s32 %v209, 1
    %vm215 = vcmp.gt.s32.totalorder %v214, 0
    %v216 = vsel %vm215, %v214, 0
    %v217 = vshrl.u32 %v216, 5
    %v218 = vand.u32 %v216, 31
    %v219 = vsub.s32 32, %v218
    %v220 = vshrl.u32 683565275, %v219
    %v221 = vshll.u32 683565275, %v218
    %v222 = vshrl.u32 2475754826, %v219
    %v223 = vor.u32 %v221, %v222
    %v224 = vshll.u32 2475754826, %v218
    %v225 = vshrl.u32 2131351028, %v219
    %v226 = vor.u32 %v224, %v225
    %v227 = vshll.u32 2131351028, %v218
    %v228 = vshrl.u32 2102212464, %v219
    %v229 = vor.u32 %v227, %v228
    %v230 = vshll.u32 2102212464, %v218
    %v231 = vshrl.u32 920167782, %v219
    %v232 = vor.u32 %v230, %v231
    %v233 = vshll.u32 920167782, %v218
    %v234 = vshrl.u32 1326507024, %v219
    %v235 = vor.u32 %v233, %v234
    %vm236 = vcmp.lt.s32.totalorder %v217, 1
    %vm237 = vcmp.lt.s32.totalorder %v217, 2
    %vm238 = vcmp.lt.s32.totalorder %v217, 3
    %vm239 = vcmp.lt.s32.totalorder %v217, 4
    %v240 = vsel %vm236, %v220, %v223
    %v241 = vsel %vm239, %v229, 2102212464
    %v242 = vsel %vm238, %v226, %v241
    %v243 = vsel %vm237, %v240, %v242
    %v244 = vsel %vm236, %v223, %v226
    %v245 = vsel %vm239, %v232, 920167782
    %v246 = vsel %vm238, %v229, %v245
    %v247 = vsel %vm237, %v244, %v246
    %v248 = vsel %vm236, %v226, %v229
    %v249 = vsel %vm239, %v235, 1326507024
    %v250 = vsel %vm238, %v232, %v249
    %v251 = vsel %vm237, %v248, %v250
    %v252 = vshll.u32 %v212, 8
    %v253 = vand.u32 %v252, 65535
    %v254 = vshrl.u32 %v252, 16
    %v255 = vand.u32 %v251, 65535
    %v256 = vshrl.u32 %v251, 16
    %v257 = vmul.u32 %v253, %v255
    %v258 = vmul.u32 %v253, %v256
    %v259 = vmul.u32 %v254, %v255
    %v260 = vmul.u32 %v254, %v256
    %v261 = vshll.u32 %v258, 16
    %v262 = vshrl.u32 %v258, 16
    %v263 = vshll.u32 %v259, 16
    %v264 = vshrl.u32 %v259, 16
    %vm265 = vc.u32 %v257, %v261
    %v266 = vsel %vm265, 1, 0
    %v267 = vadd.s32 %v257, %v261
    %v268 = vadd.s32 %v260, %v266
    %vm269 = vc.u32 %v267, %v263
    %v270 = vsel %vm269, 1, 0
    %v271 = vadd.s32 %v267, %v263
    %v272 = vadd.s32 %v268, %v270
    %v273 = vadd.s32 %v272, %v262
    %v274 = vadd.s32 %v273, %v264
    %v275 = vand.u32 %v252, 65535
    %v276 = vshrl.u32 %v252, 16
    %v277 = vand.u32 %v247, 65535
    %v278 = vshrl.u32 %v247, 16
    %v279 = vmul.u32 %v275, %v277
    %v280 = vmul.u32 %v275, %v278
    %v281 = vmul.u32 %v276, %v277
    %v282 = vmul.u32 %v276, %v278
    %v283 = vshll.u32 %v280, 16
    %v284 = vshrl.u32 %v280, 16
    %v285 = vshll.u32 %v281, 16
    %v286 = vshrl.u32 %v281, 16
    %vm287 = vc.u32 %v279, %v283
    %v288 = vsel %vm287, 1, 0
    %v289 = vadd.s32 %v279, %v283
    %v290 = vadd.s32 %v282, %v288
    %vm291 = vc.u32 %v289, %v285
    %v292 = vsel %vm291, 1, 0
    %v293 = vadd.s32 %v289, %v285
    %v294 = vadd.s32 %v290, %v292
    %v295 = vadd.s32 %v294, %v284
    %v296 = vadd.s32 %v295, %v286
    %v297 = vmul.u32 %v252, %v243
    %v298 = vadd.s32 %v274, %v293
    %vm299 = vc.u32 %v274, %v293
    %v300 = vadd.s32 %v296, 1
    %v301 = vsel %vm299, %v300, %v296
    %v302 = vadd.s32 %v297, %v301
    %v303 = vadd.s32 %v302, 536870912
    %v304 = vshrl.u32 %v303, 30
    %v305 = vshll.u32 %v304, 30
    %v306 = vsub.s32 %v302, %v305
    %vm307 = vcmp.lt.s32.totalorder %v306, 0
    %v308 = vsub.s32 0, %v306
    %v309 = vsel %vm307, %v308, %v306
    %v310 = vclz %v309
    %v311 = vsub.s32 %v310, 2
    %vm312 = vcmp.gt.s32.totalorder 0, %v311
    %v313 = vsel %vm312, 0, %v311
    %v314 = vsub.s32 32, %v313
    %v315 = vshll.u32 %v306, %v313
    %v316 = vshrl.u32 %v298, %v314
    %v317 = vor.u32 %v315, %v316
    %v318 = vsub.s32 4294967266, %v313
    %v319 = vadd.s32 %v318, 127
    %v320 = vshll.u32 %v319, 23
    %v321 = vor.u32 4788187, %v320
    %v322 = vand.u32 2147483647, %v321
    %v324 = vcvt.s32.f32 %v317
    %v325 = vmul.f32 %v324, %v322
    %v326 = vxor.u32 %v325, 2147483648
    %v327 = vsel %vm206, %v326, %v325
    %v328 = vsub.s32 4, %v304
    %v329 = vsel %vm206, %v328, %v304
    %v330 = vsel %vm205, %v195, %v327
    %v331 = vsel %vm205, 0, %v329
    %v332 = vmul.f32 %v330, %v330
    %v333 = vmul.f32 %v332, -0.001358992
    %v334 = vadd.f32 %v333, 0.041655596
    %v335 = vmul.f32 %v332, %v334
    %v336 = vadd.f32 %v335, -0.4999988
    %v337 = vmul.f32 %v332, %v336
    %v338 = vadd.f32 1.0, %v337
    %v339 = vmul.f32 %v330, %v330
    %v340 = vmul.f32 %v339, -0.00019511016
    %v341 = vadd.f32 %v340, 0.008332121
    %v342 = vmul.f32 %v339, %v341
    %v343 = vadd.f32 %v342, -0.16666654
    %v344 = vmul.f32 %v339, %v343
    %v345 = vadd.f32 %v344, 1.0
    %v346 = vmul.f32 %v345, %v330
    %vm347 = vweird.f32 %v195
    %v348 = vand.u32 %v331, 3
    %vm349 = vcmp.lt.s32.totalorder %v348, 2
    %vm350 = vcmp.eq.s32.totalorder %v348, 0
    %v351 = vxor.u32 %v346, 2147483648
    %v352 = vsel %vm350, %v338, %v351
    %vm353 = vcmp.eq.s32.totalorder %v348, 2
    %v354 = vxor.u32 %v338, 2147483648
    %v355 = vsel %vm353, %v354, %v346
    %v356 = vsel %vm349, %v352, %v355
    %v357 = vsel %vm347, nan, %v356
    %v358 = vand.u32 2147483647, %v196
    %vm359 = vcmp.le.f32.partialorder %v358, 0.7853982
    %vm360 = vcmp.lt.s32.totalorder %v196, 0
    %v361 = vand.u32 %v196, 2139095040
    %v362 = vshrl.u32 %v361, 23
    %v363 = vsub.s32 %v362, 127
    %v364 = vand.u32 2147483647, %v196
    %v365 = vand.u32 %v364, 8388607
    %v366 = vor.u32 %v365, 8388608
    %v367 = vsub.s32 0, %v366
    %v368 = vadd.s32 %v363, 1
    %vm369 = vcmp.gt.s32.totalorder %v368, 0
    %v370 = vsel %vm369, %v368, 0
    %v371 = vshrl.u32 %v370, 5
    %v372 = vand.u32 %v370, 31
    %v373 = vsub.s32 32, %v372
    %v374 = vshrl.u32 683565275, %v373
    %v375 = vshll.u32 683565275, %v372
    %v376 = vshrl.u32 2475754826, %v373
    %v377 = vor.u32 %v375, %v376
    %v378 = vshll.u32 2475754826, %v372
    %v379 = vshrl.u32 2131351028, %v373
    %v380 = vor.u32 %v378, %v379
    %v381 = vshll.u32 2131351028, %v372
    %v382 = vshrl.u32 2102212464, %v373
    %v383 = vor.u32 %v381, %v382
    %v384 = vshll.u32 2102212464, %v372
    %v385 = vshrl.u32 920167782, %v373
    %v386 = vor.u32 %v384, %v385
    %v387 = vshll.u32 920167782, %v372
    %v388 = vshrl.u32 1326507024, %v373
    %v389 = vor.u32 %v387, %v388
    %vm390 = vcmp.lt.s32.totalorder %v371, 1
    %vm391 = vcmp.lt.s32.totalorder %v371, 2
    %vm392 = vcmp.lt.s32.totalorder %v371, 3
    %vm393 = vcmp.lt.s32.totalorder %v371, 4
    %v394 = vsel %vm390, %v374, %v377
    %v395 = vsel %vm393, %v383, 2102212464
    %v396 = vsel %vm392, %v380, %v395
    %v397 = vsel %vm391, %v394, %v396
    %v398 = vsel %vm390, %v377, %v380
    %v399 = vsel %vm393, %v386, 920167782
    %v400 = vsel %vm392, %v383, %v399
    %v401 = vsel %vm391, %v398, %v400
    %v402 = vsel %vm390, %v380, %v383
    %v403 = vsel %vm393, %v389, 1326507024
    %v404 = vsel %vm392, %v386, %v403
    %v405 = vsel %vm391, %v402, %v404
    %v406 = vshll.u32 %v366, 8
    %v407 = vand.u32 %v406, 65535
    %v408 = vshrl.u32 %v406, 16
    %v409 = vand.u32 %v405, 65535
    %v410 = vshrl.u32 %v405, 16
    %v411 = vmul.u32 %v407, %v409
    %v412 = vmul.u32 %v407, %v410
    %v413 = vmul.u32 %v408, %v409
    %v414 = vmul.u32 %v408, %v410
    %v415 = vshll.u32 %v412, 16
    %v416 = vshrl.u32 %v412, 16
    %v417 = vshll.u32 %v413, 16
    %v418 = vshrl.u32 %v413, 16
    %vm419 = vc.u32 %v411, %v415
    %v420 = vsel %vm419, 1, 0
    %v421 = vadd.s32 %v411, %v415
    %v422 = vadd.s32 %v414, %v420
    %vm423 = vc.u32 %v421, %v417
    %v424 = vsel %vm423, 1, 0
    %v425 = vadd.s32 %v421, %v417
    %v426 = vadd.s32 %v422, %v424
    %v427 = vadd.s32 %v426, %v416
    %v428 = vadd.s32 %v427, %v418
    %v429 = vand.u32 %v406, 65535
    %v430 = vshrl.u32 %v406, 16
    %v431 = vand.u32 %v401, 65535
    %v432 = vshrl.u32 %v401, 16
    %v433 = vmul.u32 %v429, %v431
    %v434 = vmul.u32 %v429, %v432
    %v435 = vmul.u32 %v430, %v431
    %v436 = vmul.u32 %v430, %v432
    %v437 = vshll.u32 %v434, 16
    %v438 = vshrl.u32 %v434, 16
    %v439 = vshll.u32 %v435, 16
    %v440 = vshrl.u32 %v435, 16
    %vm441 = vc.u32 %v433, %v437
    %v442 = vsel %vm441, 1, 0
    %v443 = vadd.s32 %v433, %v437
    %v444 = vadd.s32 %v436, %v442
    %vm445 = vc.u32 %v443, %v439
    %v446 = vsel %vm445, 1, 0
    %v447 = vadd.s32 %v443, %v439
    %v448 = vadd.s32 %v444, %v446
    %v449 = vadd.s32 %v448, %v438
    %v450 = vadd.s32 %v449, %v440
    %v451 = vmul.u32 %v406, %v397
    %v452 = vadd.s32 %v428, %v447
    %vm453 = vc.u32 %v428, %v447
    %v454 = vadd.s32 %v450, 1
    %v455 = vsel %vm453, %v454, %v450
    %v456 = vadd.s32 %v451, %v455
    %v457 = vadd.s32 %v456, 536870912
    %v458 = vshrl.u32 %v457, 30
    %v459 = vshll.u32 %v458, 30
    %v460 = vsub.s32 %v456, %v459
    %vm461 = vcmp.lt.s32.totalorder %v460, 0
    %v462 = vsub.s32 0, %v460
    %v463 = vsel %vm461, %v462, %v460
    %v464 = vclz %v463
    %v465 = vsub.s32 %v464, 2
    %vm466 = vcmp.gt.s32.totalorder 0, %v465
    %v467 = vsel %vm466, 0, %v465
    %v468 = vsub.s32 32, %v467
    %v469 = vshll.u32 %v460, %v467
    %v470 = vshrl.u32 %v452, %v468
    %v471 = vor.u32 %v469, %v470
    %v472 = vsub.s32 4294967266, %v467
    %v473 = vadd.s32 %v472, 127
    %v474 = vshll.u32 %v473, 23
    %v475 = vor.u32 4788187, %v474
    %v476 = vand.u32 2147483647, %v475
    %v478 = vcvt.s32.f32 %v471
    %v479 = vmul.f32 %v478, %v476
    %v480 = vxor.u32 %v479, 2147483648
    %v481 = vsel %vm360, %v480, %v479
    %v482 = vsub.s32 4, %v458
    %v483 = vsel %vm360, %v482, %v458
    %v484 = vsel %vm359, %v196, %v481
    %v485 = vsel %vm359, 0, %v483
    %v486 = vmul.f32 %v484, %v484
    %v487 = vmul.f32 %v486, -0.001358992
    %v488 = vadd.f32 %v487, 0.041655596
    %v489 = vmul.f32 %v486, %v488
    %v490 = vadd.f32 %v489, -0.4999988
    %v491 = vmul.f32 %v486, %v490
    %v492 = vadd.f32 1.0, %v491
    %v493 = vmul.f32 %v484, %v484
    %v494 = vmul.f32 %v493, -0.00019511016
    %v495 = vadd.f32 %v494, 0.008332121
    %v496 = vmul.f32 %v493, %v495
    %v497 = vadd.f32 %v496, -0.16666654
    %v498 = vmul.f32 %v493, %v497
    %v499 = vadd.f32 %v498, 1.0
    %v500 = vmul.f32 %v499, %v484
    %vm501 = vweird.f32 %v196
    %v502 = vand.u32 %v485, 3
    %vm503 = vcmp.lt.s32.totalorder %v502, 2
    %vm504 = vcmp.eq.s32.totalorder %v502, 0
    %v505 = vxor.u32 %v500, 2147483648
    %v506 = vsel %vm504, %v492, %v505
    %vm507 = vcmp.eq.s32.totalorder %v502, 2
    %v508 = vxor.u32 %v492, 2147483648
    %v509 = vsel %vm507, %v508, %v500
    %v510 = vsel %vm503, %v506, %v509
    %v511 = vsel %vm501, nan, %v510
    %v512 = vand.u32 2147483647, %v197
    %vm513 = vcmp.le.f32.partialorder %v512, 0.7853982
    %vm514 = vcmp.lt.s32.totalorder %v197, 0
    %v515 = vand.u32 %v197, 2139095040
    %v516 = vshrl.u32 %v515, 23
    %v517 = vsub.s32 %v516, 127
    %v518 = vand.u32 2147483647, %v197
    %v519 = vand.u32 %v518, 8388607
    %v520 = vor.u32 %v519, 8388608
    %v521 = vsub.s32 0, %v520
    %v522 = vadd.s32 %v517, 1
    %vm523 = vcmp.gt.s32.totalorder %v522, 0
    %v524 = vsel %vm523, %v522, 0
    %v525 = vshrl.u32 %v524, 5
    %v526 = vand.u32 %v524, 31
    %v527 = vsub.s32 32, %v526
    %v528 = vshrl.u32 683565275, %v527
    %v529 = vshll.u32 683565275, %v526
    %v530 = vshrl.u32 2475754826, %v527
    %v531 = vor.u32 %v529, %v530
    %v532 = vshll.u32 2475754826, %v526
    %v533 = vshrl.u32 2131351028, %v527
    %v534 = vor.u32 %v532, %v533
    %v535 = vshll.u32 2131351028, %v526
    %v536 = vshrl.u32 2102212464, %v527
    %v537 = vor.u32 %v535, %v536
    %v538 = vshll.u32 2102212464, %v526
    %v539 = vshrl.u32 920167782, %v527
    %v540 = vor.u32 %v538, %v539
    %v541 = vshll.u32 920167782, %v526
    %v542 = vshrl.u32 1326507024, %v527
    %v543 = vor.u32 %v541, %v542
    %vm544 = vcmp.lt.s32.totalorder %v525, 1
    %vm545 = vcmp.lt.s32.totalorder %v525, 2
    %vm546 = vcmp.lt.s32.totalorder %v525, 3
    %vm547 = vcmp.lt.s32.totalorder %v525, 4
    %v548 = vsel %vm544, %v528, %v531
    %v549 = vsel %vm547, %v537, 2102212464
    %v550 = vsel %vm546, %v534, %v549
    %v551 = vsel %vm545, %v548, %v550
    %v552 = vsel %vm544, %v531, %v534
    %v553 = vsel %vm547, %v540, 920167782
    %v554 = vsel %vm546, %v537, %v553
    %v555 = vsel %vm545, %v552, %v554
    %v556 = vsel %vm544, %v534, %v537
    %v557 = vsel %vm547, %v543, 1326507024
    %v558 = vsel %vm546, %v540, %v557
    %v559 = vsel %vm545, %v556, %v558
    %v560 = vshll.u32 %v520, 8
    %v561 = vand.u32 %v560, 65535
    %v562 = vshrl.u32 %v560, 16
    %v563 = vand.u32 %v559, 65535
    %v564 = vshrl.u32 %v559, 16
    %v565 = vmul.u32 %v561, %v563
    %v566 = vmul.u32 %v561, %v564
    %v567 = vmul.u32 %v562, %v563
    %v568 = vmul.u32 %v562, %v564
    %v569 = vshll.u32 %v566, 16
    %v570 = vshrl.u32 %v566, 16
    %v571 = vshll.u32 %v567, 16
    %v572 = vshrl.u32 %v567, 16
    %vm573 = vc.u32 %v565, %v569
    %v574 = vsel %vm573, 1, 0
    %v575 = vadd.s32 %v565, %v569
    %v576 = vadd.s32 %v568, %v574
    %vm577 = vc.u32 %v575, %v571
    %v578 = vsel %vm577, 1, 0
    %v579 = vadd.s32 %v575, %v571
    %v580 = vadd.s32 %v576, %v578
    %v581 = vadd.s32 %v580, %v570
    %v582 = vadd.s32 %v581, %v572
    %v583 = vand.u32 %v560, 65535
    %v584 = vshrl.u32 %v560, 16
    %v585 = vand.u32 %v555, 65535
    %v586 = vshrl.u32 %v555, 16
    %v587 = vmul.u32 %v583, %v585
    %v588 = vmul.u32 %v583, %v586
    %v589 = vmul.u32 %v584, %v585
    %v590 = vmul.u32 %v584, %v586
    %v591 = vshll.u32 %v588, 16
    %v592 = vshrl.u32 %v588, 16
    %v593 = vshll.u32 %v589, 16
    %v594 = vshrl.u32 %v589, 16
    %vm595 = vc.u32 %v587, %v591
    %v596 = vsel %vm595, 1, 0
    %v597 = vadd.s32 %v587, %v591
    %v598 = vadd.s32 %v590, %v596
    %vm599 = vc.u32 %v597, %v593
    %v600 = vsel %vm599, 1, 0
    %v601 = vadd.s32 %v597, %v593
    %v602 = vadd.s32 %v598, %v600
    %v603 = vadd.s32 %v602, %v592
    %v604 = vadd.s32 %v603, %v594
    %v605 = vmul.u32 %v560, %v551
    %v606 = vadd.s32 %v582, %v601
    %vm607 = vc.u32 %v582, %v601
    %v608 = vadd.s32 %v604, 1
    %v609 = vsel %vm607, %v608, %v604
    %v610 = vadd.s32 %v605, %v609
    %v611 = vadd.s32 %v610, 536870912
    %v612 = vshrl.u32 %v611, 30
    %v613 = vshll.u32 %v612, 30
    %v614 = vsub.s32 %v610, %v613
    %vm615 = vcmp.lt.s32.totalorder %v614, 0
    %v616 = vsub.s32 0, %v614
    %v617 = vsel %vm615, %v616, %v614
    %v618 = vclz %v617
    %v619 = vsub.s32 %v618, 2
    %vm620 = vcmp.gt.s32.totalorder 0, %v619
    %v621 = vsel %vm620, 0, %v619
    %v622 = vsub.s32 32, %v621
    %v623 = vshll.u32 %v614, %v621
    %v624 = vshrl.u32 %v606, %v622
    %v625 = vor.u32 %v623, %v624
    %v626 = vsub.s32 4294967266, %v621
    %v627 = vadd.s32 %v626, 127
    %v628 = vshll.u32 %v627, 23
    %v629 = vor.u32 4788187, %v628
    %v630 = vand.u32 2147483647, %v629
    %v632 = vcvt.s32.f32 %v625
    %v633 = vmul.f32 %v632, %v630
    %v634 = vxor.u32 %v633, 2147483648
    %v635 = vsel %vm514, %v634, %v633
    %v636 = vsub.s32 4, %v612
    %v637 = vsel %vm514, %v636, %v612
    %v638 = vsel %vm513, %v197, %v635
    %v639 = vsel %vm513, 0, %v637
    %v640 = vmul.f32 %v638, %v638
    %v641 = vmul.f32 %v640, -0.001358992
    %v642 = vadd.f32 %v641, 0.041655596
    %v643 = vmul.f32 %v640, %v642
    %v644 = vadd.f32 %v643, -0.4999988
    %v645 = vmul.f32 %v640, %v644
    %v646 = vadd.f32 1.0, %v645
    %v647 = vmul.f32 %v638, %v638
    %v648 = vmul.f32 %v647, -0.00019511016
    %v649 = vadd.f32 %v648, 0.008332121
    %v650 = vmul.f32 %v647, %v649
    %v651 = vadd.f32 %v650, -0.16666654
    %v652 = vmul.f32 %v647, %v651
    %v653 = vadd.f32 %v652, 1.0
    %v654 = vmul.f32 %v653, %v638
    %vm655 = vweird.f32 %v197
    %v656 = vand.u32 %v639, 3
    %vm657 = vcmp.lt.s32.totalorder %v656, 2
    %vm658 = vcmp.eq.s32.totalorder %v656, 0
    %v659 = vxor.u32 %v654, 2147483648
    %v660 = vsel %vm658, %v646, %v659
    %vm661 = vcmp.eq.s32.totalorder %v656, 2
    %v662 = vxor.u32 %v646, 2147483648
    %v663 = vsel %vm661, %v662, %v654
    %v664 = vsel %vm657, %v660, %v663
    %v665 = vsel %vm655, nan, %v664
    %v666 = vand.u32 2147483647, %v198
    %vm667 = vcmp.le.f32.partialorder %v666, 0.7853982
    %vm668 = vcmp.lt.s32.totalorder %v198, 0
    %v669 = vand.u32 %v198, 2139095040
    %v670 = vshrl.u32 %v669, 23
    %v671 = vsub.s32 %v670, 127
    %v672 = vand.u32 2147483647, %v198
    %v673 = vand.u32 %v672, 8388607
    %v674 = vor.u32 %v673, 8388608
    %v675 = vsub.s32 0, %v674
    %v676 = vadd.s32 %v671, 1
    %vm677 = vcmp.gt.s32.totalorder %v676, 0
    %v678 = vsel %vm677, %v676, 0
    %v679 = vshrl.u32 %v678, 5
    %v680 = vand.u32 %v678, 31
    %v681 = vsub.s32 32, %v680
    %v682 = vshrl.u32 683565275, %v681
    %v683 = vshll.u32 683565275, %v680
    %v684 = vshrl.u32 2475754826, %v681
    %v685 = vor.u32 %v683, %v684
    %v686 = vshll.u32 2475754826, %v680
    %v687 = vshrl.u32 2131351028, %v681
    %v688 = vor.u32 %v686, %v687
    %v689 = vshll.u32 2131351028, %v680
    %v690 = vshrl.u32 2102212464, %v681
    %v691 = vor.u32 %v689, %v690
    %v692 = vshll.u32 2102212464, %v680
    %v693 = vshrl.u32 920167782, %v681
    %v694 = vor.u32 %v692, %v693
    %v695 = vshll.u32 920167782, %v680
    %v696 = vshrl.u32 1326507024, %v681
    %v697 = vor.u32 %v695, %v696
    %vm698 = vcmp.lt.s32.totalorder %v679, 1
    %vm699 = vcmp.lt.s32.totalorder %v679, 2
    %vm700 = vcmp.lt.s32.totalorder %v679, 3
    %vm701 = vcmp.lt.s32.totalorder %v679, 4
    %v702 = vsel %vm698, %v682, %v685
    %v703 = vsel %vm701, %v691, 2102212464
    %v704 = vsel %vm700, %v688, %v703
    %v705 = vsel %vm699, %v702, %v704
    %v706 = vsel %vm698, %v685, %v688
    %v707 = vsel %vm701, %v694, 920167782
    %v708 = vsel %vm700, %v691, %v707
    %v709 = vsel %vm699, %v706, %v708
    %v710 = vsel %vm698, %v688, %v691
    %v711 = vsel %vm701, %v697, 1326507024
    %v712 = vsel %vm700, %v694, %v711
    %v713 = vsel %vm699, %v710, %v712
    %v714 = vshll.u32 %v674, 8
    %v715 = vand.u32 %v714, 65535
    %v716 = vshrl.u32 %v714, 16
    %v717 = vand.u32 %v713, 65535
    %v718 = vshrl.u32 %v713, 16
    %v719 = vmul.u32 %v715, %v717
    %v720 = vmul.u32 %v715, %v718
    %v721 = vmul.u32 %v716, %v717
    %v722 = vmul.u32 %v716, %v718
    %v723 = vshll.u32 %v720, 16
    %v724 = vshrl.u32 %v720, 16
    %v725 = vshll.u32 %v721, 16
    %v726 = vshrl.u32 %v721, 16
    %vm727 = vc.u32 %v719, %v723
    %v728 = vsel %vm727, 1, 0
    %v729 = vadd.s32 %v719, %v723
    %v730 = vadd.s32 %v722, %v728
    %vm731 = vc.u32 %v729, %v725
    %v732 = vsel %vm731, 1, 0
    %v733 = vadd.s32 %v729, %v725
    %v734 = vadd.s32 %v730, %v732
    %v735 = vadd.s32 %v734, %v724
    %v736 = vadd.s32 %v735, %v726
    %v737 = vand.u32 %v714, 65535
    %v738 = vshrl.u32 %v714, 16
    %v739 = vand.u32 %v709, 65535
    %v740 = vshrl.u32 %v709, 16
    %v741 = vmul.u32 %v737, %v739
    %v742 = vmul.u32 %v737, %v740
    %v743 = vmul.u32 %v738, %v739
    %v744 = vmul.u32 %v738, %v740
    %v745 = vshll.u32 %v742, 16
    %v746 = vshrl.u32 %v742, 16
    %v747 = vshll.u32 %v743, 16
    %v748 = vshrl.u32 %v743, 16
    %vm749 = vc.u32 %v741, %v745
    %v750 = vsel %vm749, 1, 0
    %v751 = vadd.s32 %v741, %v745
    %v752 = vadd.s32 %v744, %v750
    %vm753 = vc.u32 %v751, %v747
    %v754 = vsel %vm753, 1, 0
    %v755 = vadd.s32 %v751, %v747
    %v756 = vadd.s32 %v752, %v754
    %v757 = vadd.s32 %v756, %v746
    %v758 = vadd.s32 %v757, %v748
    %v759 = vmul.u32 %v714, %v705
    %v760 = vadd.s32 %v736, %v755
    %vm761 = vc.u32 %v736, %v755
    %v762 = vadd.s32 %v758, 1
    %v763 = vsel %vm761, %v762, %v758
    %v764 = vadd.s32 %v759, %v763
    %v765 = vadd.s32 %v764, 536870912
    %v766 = vshrl.u32 %v765, 30
    %v767 = vshll.u32 %v766, 30
    %v768 = vsub.s32 %v764, %v767
    %vm769 = vcmp.lt.s32.totalorder %v768, 0
    %v770 = vsub.s32 0, %v768
    %v771 = vsel %vm769, %v770, %v768
    %v772 = vclz %v771
    %v773 = vsub.s32 %v772, 2
    %vm774 = vcmp.gt.s32.totalorder 0, %v773
    %v775 = vsel %vm774, 0, %v773
    %v776 = vsub.s32 32, %v775
    %v777 = vshll.u32 %v768, %v775
    %v778 = vshrl.u32 %v760, %v776
    %v779 = vor.u32 %v777, %v778
    %v780 = vsub.s32 4294967266, %v775
    %v781 = vadd.s32 %v780, 127
    %v782 = vshll.u32 %v781, 23
    %v783 = vor.u32 4788187, %v782
    %v784 = vand.u32 2147483647, %v783
    %v786 = vcvt.s32.f32 %v779
    %v787 = vmul.f32 %v786, %v784
    %v788 = vxor.u32 %v787, 2147483648
    %v789 = vsel %vm668, %v788, %v787
    %v790 = vsub.s32 4, %v766
    %v791 = vsel %vm668, %v790, %v766
    %v792 = vsel %vm667, %v198, %v789
    %v793 = vsel %vm667, 0, %v791
    %v794 = vmul.f32 %v792, %v792
    %v795 = vmul.f32 %v794, -0.001358992
    %v796 = vadd.f32 %v795, 0.041655596
    %v797 = vmul.f32 %v794, %v796
    %v798 = vadd.f32 %v797, -0.4999988
    %v799 = vmul.f32 %v794, %v798
    %v800 = vadd.f32 1.0, %v799
    %v801 = vmul.f32 %v792, %v792
    %v802 = vmul.f32 %v801, -0.00019511016
    %v803 = vadd.f32 %v802, 0.008332121
    %v804 = vmul.f32 %v801, %v803
    %v805 = vadd.f32 %v804, -0.16666654
    %v806 = vmul.f32 %v801, %v805
    %v807 = vadd.f32 %v806, 1.0
    %v808 = vmul.f32 %v807, %v792
    %vm809 = vweird.f32 %v198
    %v810 = vand.u32 %v793, 3
    %vm811 = vcmp.lt.s32.totalorder %v810, 2
    %vm812 = vcmp.eq.s32.totalorder %v810, 0
    %v813 = vxor.u32 %v808, 2147483648
    %v814 = vsel %vm812, %v800, %v813
    %vm815 = vcmp.eq.s32.totalorder %v810, 2
    %v816 = vxor.u32 %v800, 2147483648
    %v817 = vsel %vm815, %v816, %v808
    %v818 = vsel %vm811, %v814, %v817
    %v819 = vsel %vm809, nan, %v818
    %v820 = vand.u32 2147483647, %v199
    %vm821 = vcmp.le.f32.partialorder %v820, 0.7853982
    %vm822 = vcmp.lt.s32.totalorder %v199, 0
    %v823 = vand.u32 %v199, 2139095040
    %v824 = vshrl.u32 %v823, 23
    %v825 = vsub.s32 %v824, 127
    %v826 = vand.u32 2147483647, %v199
    %v827 = vand.u32 %v826, 8388607
    %v828 = vor.u32 %v827, 8388608
    %v829 = vsub.s32 0, %v828
    %v830 = vadd.s32 %v825, 1
    %vm831 = vcmp.gt.s32.totalorder %v830, 0
    %v832 = vsel %vm831, %v830, 0
    %v833 = vshrl.u32 %v832, 5
    %v834 = vand.u32 %v832, 31
    %v835 = vsub.s32 32, %v834
    %v836 = vshrl.u32 683565275, %v835
    %v837 = vshll.u32 683565275, %v834
    %v838 = vshrl.u32 2475754826, %v835
    %v839 = vor.u32 %v837, %v838
    %v840 = vshll.u32 2475754826, %v834
    %v841 = vshrl.u32 2131351028, %v835
    %v842 = vor.u32 %v840, %v841
    %v843 = vshll.u32 2131351028, %v834
    %v844 = vshrl.u32 2102212464, %v835
    %v845 = vor.u32 %v843, %v844
    %v846 = vshll.u32 2102212464, %v834
    %v847 = vshrl.u32 920167782, %v835
    %v848 = vor.u32 %v846, %v847
    %v849 = vshll.u32 920167782, %v834
    %v850 = vshrl.u32 1326507024, %v835
    %v851 = vor.u32 %v849, %v850
    %vm852 = vcmp.lt.s32.totalorder %v833, 1
    %vm853 = vcmp.lt.s32.totalorder %v833, 2
    %vm854 = vcmp.lt.s32.totalorder %v833, 3
    %vm855 = vcmp.lt.s32.totalorder %v833, 4
    %v856 = vsel %vm852, %v836, %v839
    %v857 = vsel %vm855, %v845, 2102212464
    %v858 = vsel %vm854, %v842, %v857
    %v859 = vsel %vm853, %v856, %v858
    %v860 = vsel %vm852, %v839, %v842
    %v861 = vsel %vm855, %v848, 920167782
    %v862 = vsel %vm854, %v845, %v861
    %v863 = vsel %vm853, %v860, %v862
    %v864 = vsel %vm852, %v842, %v845
    %v865 = vsel %vm855, %v851, 1326507024
    %v866 = vsel %vm854, %v848, %v865
    %v867 = vsel %vm853, %v864, %v866
    %v868 = vshll.u32 %v828, 8
    %v869 = vand.u32 %v868, 65535
    %v870 = vshrl.u32 %v868, 16
    %v871 = vand.u32 %v867, 65535
    %v872 = vshrl.u32 %v867, 16
    %v873 = vmul.u32 %v869, %v871
    %v874 = vmul.u32 %v869, %v872
    %v875 = vmul.u32 %v870, %v871
    %v876 = vmul.u32 %v870, %v872
    %v877 = vshll.u32 %v874, 16
    %v878 = vshrl.u32 %v874, 16
    %v879 = vshll.u32 %v875, 16
    %v880 = vshrl.u32 %v875, 16
    %vm881 = vc.u32 %v873, %v877
    %v882 = vsel %vm881, 1, 0
    %v883 = vadd.s32 %v873, %v877
    %v884 = vadd.s32 %v876, %v882
    %vm885 = vc.u32 %v883, %v879
    %v886 = vsel %vm885, 1, 0
    %v887 = vadd.s32 %v883, %v879
    %v888 = vadd.s32 %v884, %v886
    %v889 = vadd.s32 %v888, %v878
    %v890 = vadd.s32 %v889, %v880
    %v891 = vand.u32 %v868, 65535
    %v892 = vshrl.u32 %v868, 16
    %v893 = vand.u32 %v863, 65535
    %v894 = vshrl.u32 %v863, 16
    %v895 = vmul.u32 %v891, %v893
    %v896 = vmul.u32 %v891, %v894
    %v897 = vmul.u32 %v892, %v893
    %v898 = vmul.u32 %v892, %v894
    %v899 = vshll.u32 %v896, 16
    %v900 = vshrl.u32 %v896, 16
    %v901 = vshll.u32 %v897, 16
    %v902 = vshrl.u32 %v897, 16
    %vm903 = vc.u32 %v895, %v899
    %v904 = vsel %vm903, 1, 0
    %v905 = vadd.s32 %v895, %v899
    %v906 = vadd.s32 %v898, %v904
    %vm907 = vc.u32 %v905, %v901
    %v908 = vsel %vm907, 1, 0
    %v909 = vadd.s32 %v905, %v901
    %v910 = vadd.s32 %v906, %v908
    %v911 = vadd.s32 %v910, %v900
    %v912 = vadd.s32 %v911, %v902
    %v913 = vmul.u32 %v868, %v859
    %v914 = vadd.s32 %v890, %v909
    %vm915 = vc.u32 %v890, %v909
    %v916 = vadd.s32 %v912, 1
    %v917 = vsel %vm915, %v916, %v912
    %v918 = vadd.s32 %v913, %v917
    %v919 = vadd.s32 %v918, 536870912
    %v920 = vshrl.u32 %v919, 30
    %v921 = vshll.u32 %v920, 30
    %v922 = vsub.s32 %v918, %v921
    %vm923 = vcmp.lt.s32.totalorder %v922, 0
    %v924 = vsub.s32 0, %v922
    %v925 = vsel %vm923, %v924, %v922
    %v926 = vclz %v925
    %v927 = vsub.s32 %v926, 2
    %vm928 = vcmp.gt.s32.totalorder 0, %v927
    %v929 = vsel %vm928, 0, %v927
    %v930 = vsub.s32 32, %v929
    %v931 = vshll.u32 %v922, %v929
    %v932 = vshrl.u32 %v914, %v930
    %v933 = vor.u32 %v931, %v932
    %v934 = vsub.s32 4294967266, %v929
    %v935 = vadd.s32 %v934, 127
    %v936 = vshll.u32 %v935, 23
    %v937 = vor.u32 4788187, %v936
    %v938 = vand.u32 2147483647, %v937
    %v940 = vcvt.s32.f32 %v933
    %v941 = vmul.f32 %v940, %v938
    %v942 = vxor.u32 %v941, 2147483648
    %v943 = vsel %vm822, %v942, %v941
    %v944 = vsub.s32 4, %v920
    %v945 = vsel %vm822, %v944, %v920
    %v946 = vsel %vm821, %v199, %v943
    %v947 = vsel %vm821, 0, %v945
    %v948 = vmul.f32 %v946, %v946
    %v949 = vmul.f32 %v948, -0.001358992
    %v950 = vadd.f32 %v949, 0.041655596
    %v951 = vmul.f32 %v948, %v950
    %v952 = vadd.f32 %v951, -0.4999988
    %v953 = vmul.f32 %v948, %v952
    %v954 = vadd.f32 1.0, %v953
    %v955 = vmul.f32 %v946, %v946
    %v956 = vmul.f32 %v955, -0.00019511016
    %v957 = vadd.f32 %v956, 0.008332121
    %v958 = vmul.f32 %v955, %v957
    %v959 = vadd.f32 %v958, -0.16666654
    %v960 = vmul.f32 %v955, %v959
    %v961 = vadd.f32 %v960, 1.0
    %v962 = vmul.f32 %v961, %v946
    %vm963 = vweird.f32 %v199
    %v964 = vand.u32 %v947, 3
    %vm965 = vcmp.lt.s32.totalorder %v964, 2
    %vm966 = vcmp.eq.s32.totalorder %v964, 0
    %v967 = vxor.u32 %v962, 2147483648
    %v968 = vsel %vm966, %v954, %v967
    %vm969 = vcmp.eq.s32.totalorder %v964, 2
    %v970 = vxor.u32 %v954, 2147483648
    %v971 = vsel %vm969, %v970, %v962
    %v972 = vsel %vm965, %v968, %v971
    %v973 = vsel %vm963, nan, %v972
    %v974 = vand.u32 2147483647, %v200
    %vm975 = vcmp.le.f32.partialorder %v974, 0.7853982
    %vm976 = vcmp.lt.s32.totalorder %v200, 0
    %v977 = vand.u32 %v200, 2139095040
    %v978 = vshrl.u32 %v977, 23
    %v979 = vsub.s32 %v978, 127
    %v980 = vand.u32 2147483647, %v200
    %v981 = vand.u32 %v980, 8388607
    %v982 = vor.u32 %v981, 8388608
    %v983 = vsub.s32 0, %v982
    %v984 = vadd.s32 %v979, 1
    %vm985 = vcmp.gt.s32.totalorder %v984, 0
    %v986 = vsel %vm985, %v984, 0
    %v987 = vshrl.u32 %v986, 5
    %v988 = vand.u32 %v986, 31
    %v989 = vsub.s32 32, %v988
    %v990 = vshrl.u32 683565275, %v989
    %v991 = vshll.u32 683565275, %v988
    %v992 = vshrl.u32 2475754826, %v989
    %v993 = vor.u32 %v991, %v992
    %v994 = vshll.u32 2475754826, %v988
    %v995 = vshrl.u32 2131351028, %v989
    %v996 = vor.u32 %v994, %v995
    %v997 = vshll.u32 2131351028, %v988
    %v998 = vshrl.u32 2102212464, %v989
    %v999 = vor.u32 %v997, %v998
    %v1000 = vshll.u32 2102212464, %v988
    %v1001 = vshrl.u32 920167782, %v989
    %v1002 = vor.u32 %v1000, %v1001
    %v1003 = vshll.u32 920167782, %v988
    %v1004 = vshrl.u32 1326507024, %v989
    %v1005 = vor.u32 %v1003, %v1004
    %vm1006 = vcmp.lt.s32.totalorder %v987, 1
    %vm1007 = vcmp.lt.s32.totalorder %v987, 2
    %vm1008 = vcmp.lt.s32.totalorder %v987, 3
    %vm1009 = vcmp.lt.s32.totalorder %v987, 4
    %v1010 = vsel %vm1006, %v990, %v993
    %v1011 = vsel %vm1009, %v999, 2102212464
    %v1012 = vsel %vm1008, %v996, %v1011
    %v1013 = vsel %vm1007, %v1010, %v1012
    %v1014 = vsel %vm1006, %v993, %v996
    %v1015 = vsel %vm1009, %v1002, 920167782
    %v1016 = vsel %vm1008, %v999, %v1015
    %v1017 = vsel %vm1007, %v1014, %v1016
    %v1018 = vsel %vm1006, %v996, %v999
    %v1019 = vsel %vm1009, %v1005, 1326507024
    %v1020 = vsel %vm1008, %v1002, %v1019
    %v1021 = vsel %vm1007, %v1018, %v1020
    %v1022 = vshll.u32 %v982, 8
    %v1023 = vand.u32 %v1022, 65535
    %v1024 = vshrl.u32 %v1022, 16
    %v1025 = vand.u32 %v1021, 65535
    %v1026 = vshrl.u32 %v1021, 16
    %v1027 = vmul.u32 %v1023, %v1025
    %v1028 = vmul.u32 %v1023, %v1026
    %v1029 = vmul.u32 %v1024, %v1025
    %v1030 = vmul.u32 %v1024, %v1026
    %v1031 = vshll.u32 %v1028, 16
    %v1032 = vshrl.u32 %v1028, 16
    %v1033 = vshll.u32 %v1029, 16
    %v1034 = vshrl.u32 %v1029, 16
    %vm1035 = vc.u32 %v1027, %v1031
    %v1036 = vsel %vm1035, 1, 0
    %v1037 = vadd.s32 %v1027, %v1031
    %v1038 = vadd.s32 %v1030, %v1036
    %vm1039 = vc.u32 %v1037, %v1033
    %v1040 = vsel %vm1039, 1, 0
    %v1041 = vadd.s32 %v1037, %v1033
    %v1042 = vadd.s32 %v1038, %v1040
    %v1043 = vadd.s32 %v1042, %v1032
    %v1044 = vadd.s32 %v1043, %v1034
    %v1045 = vand.u32 %v1022, 65535
    %v1046 = vshrl.u32 %v1022, 16
    %v1047 = vand.u32 %v1017, 65535
    %v1048 = vshrl.u32 %v1017, 16
    %v1049 = vmul.u32 %v1045, %v1047
    %v1050 = vmul.u32 %v1045, %v1048
    %v1051 = vmul.u32 %v1046, %v1047
    %v1052 = vmul.u32 %v1046, %v1048
    %v1053 = vshll.u32 %v1050, 16
    %v1054 = vshrl.u32 %v1050, 16
    %v1055 = vshll.u32 %v1051, 16
    %v1056 = vshrl.u32 %v1051, 16
    %vm1057 = vc.u32 %v1049, %v1053
    %v1058 = vsel %vm1057, 1, 0
    %v1059 = vadd.s32 %v1049, %v1053
    %v1060 = vadd.s32 %v1052, %v1058
    %vm1061 = vc.u32 %v1059, %v1055
    %v1062 = vsel %vm1061, 1, 0
    %v1063 = vadd.s32 %v1059, %v1055
    %v1064 = vadd.s32 %v1060, %v1062
    %v1065 = vadd.s32 %v1064, %v1054
    %v1066 = vadd.s32 %v1065, %v1056
    %v1067 = vmul.u32 %v1022, %v1013
    %v1068 = vadd.s32 %v1044, %v1063
    %vm1069 = vc.u32 %v1044, %v1063
    %v1070 = vadd.s32 %v1066, 1
    %v1071 = vsel %vm1069, %v1070, %v1066
    %v1072 = vadd.s32 %v1067, %v1071
    %v1073 = vadd.s32 %v1072, 536870912
    %v1074 = vshrl.u32 %v1073, 30
    %v1075 = vshll.u32 %v1074, 30
    %v1076 = vsub.s32 %v1072, %v1075
    %vm1077 = vcmp.lt.s32.totalorder %v1076, 0
    %v1078 = vsub.s32 0, %v1076
    %v1079 = vsel %vm1077, %v1078, %v1076
    %v1080 = vclz %v1079
    %v1081 = vsub.s32 %v1080, 2
    %vm1082 = vcmp.gt.s32.totalorder 0, %v1081
    %v1083 = vsel %vm1082, 0, %v1081
    %v1084 = vsub.s32 32, %v1083
    %v1085 = vshll.u32 %v1076, %v1083
    %v1086 = vshrl.u32 %v1068, %v1084
    %v1087 = vor.u32 %v1085, %v1086
    %v1088 = vsub.s32 4294967266, %v1083
    %v1089 = vadd.s32 %v1088, 127
    %v1090 = vshll.u32 %v1089, 23
    %v1091 = vor.u32 4788187, %v1090
    %v1092 = vand.u32 2147483647, %v1091
    %v1094 = vcvt.s32.f32 %v1087
    %v1095 = vmul.f32 %v1094, %v1092
    %v1096 = vxor.u32 %v1095, 2147483648
    %v1097 = vsel %vm976, %v1096, %v1095
    %v1098 = vsub.s32 4, %v1074
    %v1099 = vsel %vm976, %v1098, %v1074
    %v1100 = vsel %vm975, %v200, %v1097
    %v1101 = vsel %vm975, 0, %v1099
    %v1102 = vmul.f32 %v1100, %v1100
    %v1103 = vmul.f32 %v1102, -0.001358992
    %v1104 = vadd.f32 %v1103, 0.041655596
    %v1105 = vmul.f32 %v1102, %v1104
    %v1106 = vadd.f32 %v1105, -0.4999988
    %v1107 = vmul.f32 %v1102, %v1106
    %v1108 = vadd.f32 1.0, %v1107
    %v1109 = vmul.f32 %v1100, %v1100
    %v1110 = vmul.f32 %v1109, -0.00019511016
    %v1111 = vadd.f32 %v1110, 0.008332121
    %v1112 = vmul.f32 %v1109, %v1111
    %v1113 = vadd.f32 %v1112, -0.16666654
    %v1114 = vmul.f32 %v1109, %v1113
    %v1115 = vadd.f32 %v1114, 1.0
    %v1116 = vmul.f32 %v1115, %v1100
    %vm1117 = vweird.f32 %v200
    %v1118 = vand.u32 %v1101, 3
    %vm1119 = vcmp.lt.s32.totalorder %v1118, 2
    %vm1120 = vcmp.eq.s32.totalorder %v1118, 0
    %v1121 = vxor.u32 %v1116, 2147483648
    %v1122 = vsel %vm1120, %v1108, %v1121
    %vm1123 = vcmp.eq.s32.totalorder %v1118, 2
    %v1124 = vxor.u32 %v1108, 2147483648
    %v1125 = vsel %vm1123, %v1124, %v1116
    %v1126 = vsel %vm1119, %v1122, %v1125
    %v1127 = vsel %vm1117, nan, %v1126
    %v1128 = vand.u32 2147483647, %v201
    %vm1129 = vcmp.le.f32.partialorder %v1128, 0.7853982
    %vm1130 = vcmp.lt.s32.totalorder %v201, 0
    %v1131 = vand.u32 %v201, 2139095040
    %v1132 = vshrl.u32 %v1131, 23
    %v1133 = vsub.s32 %v1132, 127
    %v1134 = vand.u32 2147483647, %v201
    %v1135 = vand.u32 %v1134, 8388607
    %v1136 = vor.u32 %v1135, 8388608
    %v1137 = vsub.s32 0, %v1136
    %v1138 = vadd.s32 %v1133, 1
    %vm1139 = vcmp.gt.s32.totalorder %v1138, 0
    %v1140 = vsel %vm1139, %v1138, 0
    %v1141 = vshrl.u32 %v1140, 5
    %v1142 = vand.u32 %v1140, 31
    %v1143 = vsub.s32 32, %v1142
    %v1144 = vshrl.u32 683565275, %v1143
    %v1145 = vshll.u32 683565275, %v1142
    %v1146 = vshrl.u32 2475754826, %v1143
    %v1147 = vor.u32 %v1145, %v1146
    %v1148 = vshll.u32 2475754826, %v1142
    %v1149 = vshrl.u32 2131351028, %v1143
    %v1150 = vor.u32 %v1148, %v1149
    %v1151 = vshll.u32 2131351028, %v1142
    %v1152 = vshrl.u32 2102212464, %v1143
    %v1153 = vor.u32 %v1151, %v1152
    %v1154 = vshll.u32 2102212464, %v1142
    %v1155 = vshrl.u32 920167782, %v1143
    %v1156 = vor.u32 %v1154, %v1155
    %v1157 = vshll.u32 920167782, %v1142
    %v1158 = vshrl.u32 1326507024, %v1143
    %v1159 = vor.u32 %v1157, %v1158
    %vm1160 = vcmp.lt.s32.totalorder %v1141, 1
    %vm1161 = vcmp.lt.s32.totalorder %v1141, 2
    %vm1162 = vcmp.lt.s32.totalorder %v1141, 3
    %vm1163 = vcmp.lt.s32.totalorder %v1141, 4
    %v1164 = vsel %vm1160, %v1144, %v1147
    %v1165 = vsel %vm1163, %v1153, 2102212464
    %v1166 = vsel %vm1162, %v1150, %v1165
    %v1167 = vsel %vm1161, %v1164, %v1166
    %v1168 = vsel %vm1160, %v1147, %v1150
    %v1169 = vsel %vm1163, %v1156, 920167782
    %v1170 = vsel %vm1162, %v1153, %v1169
    %v1171 = vsel %vm1161, %v1168, %v1170
    %v1172 = vsel %vm1160, %v1150, %v1153
    %v1173 = vsel %vm1163, %v1159, 1326507024
    %v1174 = vsel %vm1162, %v1156, %v1173
    %v1175 = vsel %vm1161, %v1172, %v1174
    %v1176 = vshll.u32 %v1136, 8
    %v1177 = vand.u32 %v1176, 65535
    %v1178 = vshrl.u32 %v1176, 16
    %v1179 = vand.u32 %v1175, 65535
    %v1180 = vshrl.u32 %v1175, 16
    %v1181 = vmul.u32 %v1177, %v1179
    %v1182 = vmul.u32 %v1177, %v1180
    %v1183 = vmul.u32 %v1178, %v1179
    %v1184 = vmul.u32 %v1178, %v1180
    %v1185 = vshll.u32 %v1182, 16
    %v1186 = vshrl.u32 %v1182, 16
    %v1187 = vshll.u32 %v1183, 16
    %v1188 = vshrl.u32 %v1183, 16
    %vm1189 = vc.u32 %v1181, %v1185
    %v1190 = vsel %vm1189, 1, 0
    %v1191 = vadd.s32 %v1181, %v1185
    %v1192 = vadd.s32 %v1184, %v1190
    %vm1193 = vc.u32 %v1191, %v1187
    %v1194 = vsel %vm1193, 1, 0
    %v1195 = vadd.s32 %v1191, %v1187
    %v1196 = vadd.s32 %v1192, %v1194
    %v1197 = vadd.s32 %v1196, %v1186
    %v1198 = vadd.s32 %v1197, %v1188
    %v1199 = vand.u32 %v1176, 65535
    %v1200 = vshrl.u32 %v1176, 16
    %v1201 = vand.u32 %v1171, 65535
    %v1202 = vshrl.u32 %v1171, 16
    %v1203 = vmul.u32 %v1199, %v1201
    %v1204 = vmul.u32 %v1199, %v1202
    %v1205 = vmul.u32 %v1200, %v1201
    %v1206 = vmul.u32 %v1200, %v1202
    %v1207 = vshll.u32 %v1204, 16
    %v1208 = vshrl.u32 %v1204, 16
    %v1209 = vshll.u32 %v1205, 16
    %v1210 = vshrl.u32 %v1205, 16
    %vm1211 = vc.u32 %v1203, %v1207
    %v1212 = vsel %vm1211, 1, 0
    %v1213 = vadd.s32 %v1203, %v1207
    %v1214 = vadd.s32 %v1206, %v1212
    %vm1215 = vc.u32 %v1213, %v1209
    %v1216 = vsel %vm1215, 1, 0
    %v1217 = vadd.s32 %v1213, %v1209
    %v1218 = vadd.s32 %v1214, %v1216
    %v1219 = vadd.s32 %v1218, %v1208
    %v1220 = vadd.s32 %v1219, %v1210
    %v1221 = vmul.u32 %v1176, %v1167
    %v1222 = vadd.s32 %v1198, %v1217
    %vm1223 = vc.u32 %v1198, %v1217
    %v1224 = vadd.s32 %v1220, 1
    %v1225 = vsel %vm1223, %v1224, %v1220
    %v1226 = vadd.s32 %v1221, %v1225
    %v1227 = vadd.s32 %v1226, 536870912
    %v1228 = vshrl.u32 %v1227, 30
    %v1229 = vshll.u32 %v1228, 30
    %v1230 = vsub.s32 %v1226, %v1229
    %vm1231 = vcmp.lt.s32.totalorder %v1230, 0
    %v1232 = vsub.s32 0, %v1230
    %v1233 = vsel %vm1231, %v1232, %v1230
    %v1234 = vclz %v1233
    %v1235 = vsub.s32 %v1234, 2
    %vm1236 = vcmp.gt.s32.totalorder 0, %v1235
    %v1237 = vsel %vm1236, 0, %v1235
    %v1238 = vsub.s32 32, %v1237
    %v1239 = vshll.u32 %v1230, %v1237
    %v1240 = vshrl.u32 %v1222, %v1238
    %v1241 = vor.u32 %v1239, %v1240
    %v1242 = vsub.s32 4294967266, %v1237
    %v1243 = vadd.s32 %v1242, 127
    %v1244 = vshll.u32 %v1243, 23
    %v1245 = vor.u32 4788187, %v1244
    %v1246 = vand.u32 2147483647, %v1245
    %v1248 = vcvt.s32.f32 %v1241
    %v1249 = vmul.f32 %v1248, %v1246
    %v1250 = vxor.u32 %v1249, 2147483648
    %v1251 = vsel %vm1130, %v1250, %v1249
    %v1252 = vsub.s32 4, %v1228
    %v1253 = vsel %vm1130, %v1252, %v1228
    %v1254 = vsel %vm1129, %v201, %v1251
    %v1255 = vsel %vm1129, 0, %v1253
    %v1256 = vmul.f32 %v1254, %v1254
    %v1257 = vmul.f32 %v1256, -0.001358992
    %v1258 = vadd.f32 %v1257, 0.041655596
    %v1259 = vmul.f32 %v1256, %v1258
    %v1260 = vadd.f32 %v1259, -0.4999988
    %v1261 = vmul.f32 %v1256, %v1260
    %v1262 = vadd.f32 1.0, %v1261
    %v1263 = vmul.f32 %v1254, %v1254
    %v1264 = vmul.f32 %v1263, -0.00019511016
    %v1265 = vadd.f32 %v1264, 0.008332121
    %v1266 = vmul.f32 %v1263, %v1265
    %v1267 = vadd.f32 %v1266, -0.16666654
    %v1268 = vmul.f32 %v1263, %v1267
    %v1269 = vadd.f32 %v1268, 1.0
    %v1270 = vmul.f32 %v1269, %v1254
    %vm1271 = vweird.f32 %v201
    %v1272 = vand.u32 %v1255, 3
    %vm1273 = vcmp.lt.s32.totalorder %v1272, 2
    %vm1274 = vcmp.eq.s32.totalorder %v1272, 0
    %v1275 = vxor.u32 %v1270, 2147483648
    %v1276 = vsel %vm1274, %v1262, %v1275
    %vm1277 = vcmp.eq.s32.totalorder %v1272, 2
    %v1278 = vxor.u32 %v1262, 2147483648
    %v1279 = vsel %vm1277, %v1278, %v1270
    %v1280 = vsel %vm1273, %v1276, %v1279
    %v1281 = vsel %vm1271, nan, %v1280
    %v1282 = vand.u32 2147483647, %v202
    %vm1283 = vcmp.le.f32.partialorder %v1282, 0.7853982
    %vm1284 = vcmp.lt.s32.totalorder %v202, 0
    %v1285 = vand.u32 %v202, 2139095040
    %v1286 = vshrl.u32 %v1285, 23
    %v1287 = vsub.s32 %v1286, 127
    %v1288 = vand.u32 2147483647, %v202
    %v1289 = vand.u32 %v1288, 8388607
    %v1290 = vor.u32 %v1289, 8388608
    %v1291 = vsub.s32 0, %v1290
    %v1292 = vadd.s32 %v1287, 1
    %vm1293 = vcmp.gt.s32.totalorder %v1292, 0
    %v1294 = vsel %vm1293, %v1292, 0
    %v1295 = vshrl.u32 %v1294, 5
    %v1296 = vand.u32 %v1294, 31
    %v1297 = vsub.s32 32, %v1296
    %v1298 = vshrl.u32 683565275, %v1297
    %v1299 = vshll.u32 683565275, %v1296
    %v1300 = vshrl.u32 2475754826, %v1297
    %v1301 = vor.u32 %v1299, %v1300
    %v1302 = vshll.u32 2475754826, %v1296
    %v1303 = vshrl.u32 2131351028, %v1297
    %v1304 = vor.u32 %v1302, %v1303
    %v1305 = vshll.u32 2131351028, %v1296
    %v1306 = vshrl.u32 2102212464, %v1297
    %v1307 = vor.u32 %v1305, %v1306
    %v1308 = vshll.u32 2102212464, %v1296
    %v1309 = vshrl.u32 920167782, %v1297
    %v1310 = vor.u32 %v1308, %v1309
    %v1311 = vshll.u32 920167782, %v1296
    %v1312 = vshrl.u32 1326507024, %v1297
    %v1313 = vor.u32 %v1311, %v1312
    %vm1314 = vcmp.lt.s32.totalorder %v1295, 1
    %vm1315 = vcmp.lt.s32.totalorder %v1295, 2
    %vm1316 = vcmp.lt.s32.totalorder %v1295, 3
    %vm1317 = vcmp.lt.s32.totalorder %v1295, 4
    %v1318 = vsel %vm1314, %v1298, %v1301
    %v1319 = vsel %vm1317, %v1307, 2102212464
    %v1320 = vsel %vm1316, %v1304, %v1319
    %v1321 = vsel %vm1315, %v1318, %v1320
    %v1322 = vsel %vm1314, %v1301, %v1304
    %v1323 = vsel %vm1317, %v1310, 920167782
    %v1324 = vsel %vm1316, %v1307, %v1323
    %v1325 = vsel %vm1315, %v1322, %v1324
    %v1326 = vsel %vm1314, %v1304, %v1307
    %v1327 = vsel %vm1317, %v1313, 1326507024
    %v1328 = vsel %vm1316, %v1310, %v1327
    %v1329 = vsel %vm1315, %v1326, %v1328
    %v1330 = vshll.u32 %v1290, 8
    %v1331 = vand.u32 %v1330, 65535
    %v1332 = vshrl.u32 %v1330, 16
    %v1333 = vand.u32 %v1329, 65535
    %v1334 = vshrl.u32 %v1329, 16
    %v1335 = vmul.u32 %v1331, %v1333
    %v1336 = vmul.u32 %v1331, %v1334
    %v1337 = vmul.u32 %v1332, %v1333
    %v1338 = vmul.u32 %v1332, %v1334
    %v1339 = vshll.u32 %v1336, 16
    %v1340 = vshrl.u32 %v1336, 16
    %v1341 = vshll.u32 %v1337, 16
    %v1342 = vshrl.u32 %v1337, 16
    %vm1343 = vc.u32 %v1335, %v1339
    %v1344 = vsel %vm1343, 1, 0
    %v1345 = vadd.s32 %v1335, %v1339
    %v1346 = vadd.s32 %v1338, %v1344
    %vm1347 = vc.u32 %v1345, %v1341
    %v1348 = vsel %vm1347, 1, 0
    %v1349 = vadd.s32 %v1345, %v1341
    %v1350 = vadd.s32 %v1346, %v1348
    %v1351 = vadd.s32 %v1350, %v1340
    %v1352 = vadd.s32 %v1351, %v1342
    %v1353 = vand.u32 %v1330, 65535
    %v1354 = vshrl.u32 %v1330, 16
    %v1355 = vand.u32 %v1325, 65535
    %v1356 = vshrl.u32 %v1325, 16
    %v1357 = vmul.u32 %v1353, %v1355
    %v1358 = vmul.u32 %v1353, %v1356
    %v1359 = vmul.u32 %v1354, %v1355
    %v1360 = vmul.u32 %v1354, %v1356
    %v1361 = vshll.u32 %v1358, 16
    %v1362 = vshrl.u32 %v1358, 16
    %v1363 = vshll.u32 %v1359, 16
    %v1364 = vshrl.u32 %v1359, 16
    %vm1365 = vc.u32 %v1357, %v1361
    %v1366 = vsel %vm1365, 1, 0
    %v1367 = vadd.s32 %v1357, %v1361
    %v1368 = vadd.s32 %v1360, %v1366
    %vm1369 = vc.u32 %v1367, %v1363
    %v1370 = vsel %vm1369, 1, 0
    %v1371 = vadd.s32 %v1367, %v1363
    %v1372 = vadd.s32 %v1368, %v1370
    %v1373 = vadd.s32 %v1372, %v1362
    %v1374 = vadd.s32 %v1373, %v1364
    %v1375 = vmul.u32 %v1330, %v1321
    %v1376 = vadd.s32 %v1352, %v1371
    %vm1377 = vc.u32 %v1352, %v1371
    %v1378 = vadd.s32 %v1374, 1
    %v1379 = vsel %vm1377, %v1378, %v1374
    %v1380 = vadd.s32 %v1375, %v1379
    %v1381 = vadd.s32 %v1380, 536870912
    %v1382 = vshrl.u32 %v1381, 30
    %v1383 = vshll.u32 %v1382, 30
    %v1384 = vsub.s32 %v1380, %v1383
    %vm1385 = vcmp.lt.s32.totalorder %v1384, 0
    %v1386 = vsub.s32 0, %v1384
    %v1387 = vsel %vm1385, %v1386, %v1384
    %v1388 = vclz %v1387
    %v1389 = vsub.s32 %v1388, 2
    %vm1390 = vcmp.gt.s32.totalorder 0, %v1389
    %v1391 = vsel %vm1390, 0, %v1389
    %v1392 = vsub.s32 32, %v1391
    %v1393 = vshll.u32 %v1384, %v1391
    %v1394 = vshrl.u32 %v1376, %v1392
    %v1395 = vor.u32 %v1393, %v1394
    %v1396 = vsub.s32 4294967266, %v1391
    %v1397 = vadd.s32 %v1396, 127
    %v1398 = vshll.u32 %v1397, 23
    %v1399 = vor.u32 4788187, %v1398
    %v1400 = vand.u32 2147483647, %v1399
    %v1402 = vcvt.s32.f32 %v1395
    %v1403 = vmul.f32 %v1402, %v1400
    %v1404 = vxor.u32 %v1403, 2147483648
    %v1405 = vsel %vm1284, %v1404, %v1403
    %v1406 = vsub.s32 4, %v1382
    %v1407 = vsel %vm1284, %v1406, %v1382
    %v1408 = vsel %vm1283, %v202, %v1405
    %v1409 = vsel %vm1283, 0, %v1407
    %v1410 = vmul.f32 %v1408, %v1408
    %v1411 = vmul.f32 %v1410, -0.001358992
    %v1412 = vadd.f32 %v1411, 0.041655596
    %v1413 = vmul.f32 %v1410, %v1412
    %v1414 = vadd.f32 %v1413, -0.4999988
    %v1415 = vmul.f32 %v1410, %v1414
    %v1416 = vadd.f32 1.0, %v1415
    %v1417 = vmul.f32 %v1408, %v1408
    %v1418 = vmul.f32 %v1417, -0.00019511016
    %v1419 = vadd.f32 %v1418, 0.008332121
    %v1420 = vmul.f32 %v1417, %v1419
    %v1421 = vadd.f32 %v1420, -0.16666654
    %v1422 = vmul.f32 %v1417, %v1421
    %v1423 = vadd.f32 %v1422, 1.0
    %v1424 = vmul.f32 %v1423, %v1408
    %vm1425 = vweird.f32 %v202
    %v1426 = vand.u32 %v1409, 3
    %vm1427 = vcmp.lt.s32.totalorder %v1426, 2
    %vm1428 = vcmp.eq.s32.totalorder %v1426, 0
    %v1429 = vxor.u32 %v1424, 2147483648
    %v1430 = vsel %vm1428, %v1416, %v1429
    %vm1431 = vcmp.eq.s32.totalorder %v1426, 2
    %v1432 = vxor.u32 %v1416, 2147483648
    %v1433 = vsel %vm1431, %v1432, %v1424
    %v1434 = vsel %vm1427, %v1430, %v1433
    %v1435 = vsel %vm1425, nan, %v1434
    %v1436 = vand.u32 2147483647, %v203
    %vm1437 = vcmp.le.f32.partialorder %v1436, 0.7853982
    %vm1438 = vcmp.lt.s32.totalorder %v203, 0
    %v1439 = vand.u32 %v203, 2139095040
    %v1440 = vshrl.u32 %v1439, 23
    %v1441 = vsub.s32 %v1440, 127
    %v1442 = vand.u32 2147483647, %v203
    %v1443 = vand.u32 %v1442, 8388607
    %v1444 = vor.u32 %v1443, 8388608
    %v1445 = vsub.s32 0, %v1444
    %v1446 = vadd.s32 %v1441, 1
    %vm1447 = vcmp.gt.s32.totalorder %v1446, 0
    %v1448 = vsel %vm1447, %v1446, 0
    %v1449 = vshrl.u32 %v1448, 5
    %v1450 = vand.u32 %v1448, 31
    %v1451 = vsub.s32 32, %v1450
    %v1452 = vshrl.u32 683565275, %v1451
    %v1453 = vshll.u32 683565275, %v1450
    %v1454 = vshrl.u32 2475754826, %v1451
    %v1455 = vor.u32 %v1453, %v1454
    %v1456 = vshll.u32 2475754826, %v1450
    %v1457 = vshrl.u32 2131351028, %v1451
    %v1458 = vor.u32 %v1456, %v1457
    %v1459 = vshll.u32 2131351028, %v1450
    %v1460 = vshrl.u32 2102212464, %v1451
    %v1461 = vor.u32 %v1459, %v1460
    %v1462 = vshll.u32 2102212464, %v1450
    %v1463 = vshrl.u32 920167782, %v1451
    %v1464 = vor.u32 %v1462, %v1463
    %v1465 = vshll.u32 920167782, %v1450
    %v1466 = vshrl.u32 1326507024, %v1451
    %v1467 = vor.u32 %v1465, %v1466
    %vm1468 = vcmp.lt.s32.totalorder %v1449, 1
    %vm1469 = vcmp.lt.s32.totalorder %v1449, 2
    %vm1470 = vcmp.lt.s32.totalorder %v1449, 3
    %vm1471 = vcmp.lt.s32.totalorder %v1449, 4
    %v1472 = vsel %vm1468, %v1452, %v1455
    %v1473 = vsel %vm1471, %v1461, 2102212464
    %v1474 = vsel %vm1470, %v1458, %v1473
    %v1475 = vsel %vm1469, %v1472, %v1474
    %v1476 = vsel %vm1468, %v1455, %v1458
    %v1477 = vsel %vm1471, %v1464, 920167782
    %v1478 = vsel %vm1470, %v1461, %v1477
    %v1479 = vsel %vm1469, %v1476, %v1478
    %v1480 = vsel %vm1468, %v1458, %v1461
    %v1481 = vsel %vm1471, %v1467, 1326507024
    %v1482 = vsel %vm1470, %v1464, %v1481
    %v1483 = vsel %vm1469, %v1480, %v1482
    %v1484 = vshll.u32 %v1444, 8
    %v1485 = vand.u32 %v1484, 65535
    %v1486 = vshrl.u32 %v1484, 16
    %v1487 = vand.u32 %v1483, 65535
    %v1488 = vshrl.u32 %v1483, 16
    %v1489 = vmul.u32 %v1485, %v1487
    %v1490 = vmul.u32 %v1485, %v1488
    %v1491 = vmul.u32 %v1486, %v1487
    %v1492 = vmul.u32 %v1486, %v1488
    %v1493 = vshll.u32 %v1490, 16
    %v1494 = vshrl.u32 %v1490, 16
    %v1495 = vshll.u32 %v1491, 16
    %v1496 = vshrl.u32 %v1491, 16
    %vm1497 = vc.u32 %v1489, %v1493
    %v1498 = vsel %vm1497, 1, 0
    %v1499 = vadd.s32 %v1489, %v1493
    %v1500 = vadd.s32 %v1492, %v1498
    %vm1501 = vc.u32 %v1499, %v1495
    %v1502 = vsel %vm1501, 1, 0
    %v1503 = vadd.s32 %v1499, %v1495
    %v1504 = vadd.s32 %v1500, %v1502
    %v1505 = vadd.s32 %v1504, %v1494
    %v1506 = vadd.s32 %v1505, %v1496
    %v1507 = vand.u32 %v1484, 65535
    %v1508 = vshrl.u32 %v1484, 16
    %v1509 = vand.u32 %v1479, 65535
    %v1510 = vshrl.u32 %v1479, 16
    %v1511 = vmul.u32 %v1507, %v1509
    %v1512 = vmul.u32 %v1507, %v1510
    %v1513 = vmul.u32 %v1508, %v1509
    %v1514 = vmul.u32 %v1508, %v1510
    %v1515 = vshll.u32 %v1512, 16
    %v1516 = vshrl.u32 %v1512, 16
    %v1517 = vshll.u32 %v1513, 16
    %v1518 = vshrl.u32 %v1513, 16
    %vm1519 = vc.u32 %v1511, %v1515
    %v1520 = vsel %vm1519, 1, 0
    %v1521 = vadd.s32 %v1511, %v1515
    %v1522 = vadd.s32 %v1514, %v1520
    %vm1523 = vc.u32 %v1521, %v1517
    %v1524 = vsel %vm1523, 1, 0
    %v1525 = vadd.s32 %v1521, %v1517
    %v1526 = vadd.s32 %v1522, %v1524
    %v1527 = vadd.s32 %v1526, %v1516
    %v1528 = vadd.s32 %v1527, %v1518
    %v1529 = vmul.u32 %v1484, %v1475
    %v1530 = vadd.s32 %v1506, %v1525
    %vm1531 = vc.u32 %v1506, %v1525
    %v1532 = vadd.s32 %v1528, 1
    %v1533 = vsel %vm1531, %v1532, %v1528
    %v1534 = vadd.s32 %v1529, %v1533
    %v1535 = vadd.s32 %v1534, 536870912
    %v1536 = vshrl.u32 %v1535, 30
    %v1537 = vshll.u32 %v1536, 30
    %v1538 = vsub.s32 %v1534, %v1537
    %vm1539 = vcmp.lt.s32.totalorder %v1538, 0
    %v1540 = vsub.s32 0, %v1538
    %v1541 = vsel %vm1539, %v1540, %v1538
    %v1542 = vclz %v1541
    %v1543 = vsub.s32 %v1542, 2
    %vm1544 = vcmp.gt.s32.totalorder 0, %v1543
    %v1545 = vsel %vm1544, 0, %v1543
    %v1546 = vsub.s32 32, %v1545
    %v1547 = vshll.u32 %v1538, %v1545
    %v1548 = vshrl.u32 %v1530, %v1546
    %v1549 = vor.u32 %v1547, %v1548
    %v1550 = vsub.s32 4294967266, %v1545
    %v1551 = vadd.s32 %v1550, 127
    %v1552 = vshll.u32 %v1551, 23
    %v1553 = vor.u32 4788187, %v1552
    %v1554 = vand.u32 2147483647, %v1553
    %v1556 = vcvt.s32.f32 %v1549
    %v1557 = vmul.f32 %v1556, %v1554
    %v1558 = vxor.u32 %v1557, 2147483648
    %v1559 = vsel %vm1438, %v1558, %v1557
    %v1560 = vsub.s32 4, %v1536
    %v1561 = vsel %vm1438, %v1560, %v1536
    %v1562 = vsel %vm1437, %v203, %v1559
    %v1563 = vsel %vm1437, 0, %v1561
    %v1564 = vmul.f32 %v1562, %v1562
    %v1565 = vmul.f32 %v1564, -0.001358992
    %v1566 = vadd.f32 %v1565, 0.041655596
    %v1567 = vmul.f32 %v1564, %v1566
    %v1568 = vadd.f32 %v1567, -0.4999988
    %v1569 = vmul.f32 %v1564, %v1568
    %v1570 = vadd.f32 1.0, %v1569
    %v1571 = vmul.f32 %v1562, %v1562
    %v1572 = vmul.f32 %v1571, -0.00019511016
    %v1573 = vadd.f32 %v1572, 0.008332121
    %v1574 = vmul.f32 %v1571, %v1573
    %v1575 = vadd.f32 %v1574, -0.16666654
    %v1576 = vmul.f32 %v1571, %v1575
    %v1577 = vadd.f32 %v1576, 1.0
    %v1578 = vmul.f32 %v1577, %v1562
    %vm1579 = vweird.f32 %v203
    %v1580 = vand.u32 %v1563, 3
    %vm1581 = vcmp.lt.s32.totalorder %v1580, 2
    %vm1582 = vcmp.eq.s32.totalorder %v1580, 0
    %v1583 = vxor.u32 %v1578, 2147483648
    %v1584 = vsel %vm1582, %v1570, %v1583
    %vm1585 = vcmp.eq.s32.totalorder %v1580, 2
    %v1586 = vxor.u32 %v1570, 2147483648
    %v1587 = vsel %vm1585, %v1586, %v1578
    %v1588 = vsel %vm1581, %v1584, %v1587
    %v1589 = vsel %vm1579, nan, %v1588
    %vm1590 = vcmask 588800
    %v1592 = vsel %vm1590, %v28, 0
    %v1595 = vsel %vm1590, %v29, 0
    %v1598 = vsel %vm1590, %v30, 0
    %v1601 = vsel %vm1590, %v31, 0
    %v1604 = vsel %vm1590, %v32, 0
    %1606 = vmatpush.msra.mxu0 0.0
    %1607 = vmatpush.msra.mxu0 0.0
    %1608 = vmatpush.msra.mxu0 0.0
    %1609 = vmatpush.msra.mxu0 0.0
    %1610 = vmatpush.msra.mxu0 0.0
    %1611 = vmatpush.msra.mxu0 0.0
    %1612 = vmatpush.msra.mxu0 0.0
    %1613 = vmatpush.msra.mxu0 %v1589
    %1614 = vmatpush.msra.mxu0 %v1435
    %1615 = vmatpush.msra.mxu0 %v1281
    %1616 = vmatpush.msra.mxu0 %v1127
    %1617 = vmatpush.msra.mxu0 %v973
    %1618 = vmatpush.msra.mxu0 %v819
    %1619 = vmatpush.msra.mxu0 %v665
    %1620 = vmatpush.msra.mxu0 %v511
    %1621 = vmatpush.msra.mxu0 %v357
    %1622 = vmatmul.f32.gmra.mxu0 %v1592
    %v1623 = vpop.f32.mrf.mxu0
    %v1624 = vadd.f32 0.0, %v1623
    %1625 = vmatmul.f32.gmra.mxu0 %v1595
    %v1626 = vpop.f32.mrf.mxu0
    %v1627 = vadd.f32 0.0, %v1626
    %1628 = vmatmul.f32.gmra.mxu0 %v1598
    %v1629 = vpop.f32.mrf.mxu0
    %v1630 = vadd.f32 0.0, %v1629
    %1631 = vmatmul.f32.gmra.mxu0 %v1601
    %v1632 = vpop.f32.mrf.mxu0
    %v1633 = vadd.f32 0.0, %v1632
    %1634 = vmatmul.f32.gmra.mxu0 %v1604
    %v1635 = vpop.f32.mrf.mxu0
    %v1636 = vadd.f32 0.0, %v1635
    %1637 = vdwg.mxu0
    %v1638 = vmax.f32 %v1624, 0.0
    %v1639 = vmax.f32 %v1627, 0.0
    %v1640 = vmax.f32 %v1630, 0.0
    %v1641 = vmax.f32 %v1633, 0.0
    %v1642 = vmax.f32 %v1636, 0.0
    %v1643 = vmul.f32 %v1638, %v125
    %v1644 = vmul.f32 %v1639, %v128
    %v1645 = vmul.f32 %v1640, %v131
    %v1646 = vmul.f32 %v1641, %v134
    %v1647 = vmul.f32 %v1642, %v137
    %v1649 = vsel %vm39, %v33, 0
    %v1652 = vsel %vm39, %v34, 0
    %v1655 = vsel %vm39, %v35, 0
    %v1658 = vsel %vm39, %v36, 0
    %v1661 = vsel %vm39, %v37, 0
    %1663 = vmatpush.msra.mxu0 0.0
    %1664 = vmatpush.msra.mxu0 0.0
    %1665 = vmatpush.msra.mxu0 0.0
    %1666 = vmatpush.msra.mxu0 0.0
    %1667 = vmatpush.msra.mxu0 0.0
    %1668 = vmatpush.msra.mxu0 0.0
    %1669 = vmatpush.msra.mxu0 0.0
    %1670 = vmatpush.msra.mxu0 0.0
    %1671 = vmatpush.msra.mxu0 0.0
    %1672 = vmatpush.msra.mxu0 0.0
    %1673 = vmatpush.msra.mxu0 0.0
    %1674 = vmatpush.msra.mxu0 %v1647
    %1675 = vmatpush.msra.mxu0 %v1646
    %1676 = vmatpush.msra.mxu0 %v1645
    %1677 = vmatpush.msra.mxu0 %v1644
    %1678 = vmatpush.msra.mxu0 %v1643
    %1679 = vmatmul.f32.gmra.mxu0 %v1649
    %v1680 = vpop.f32.mrf.mxu0
    %v1681 = vadd.f32 0.0, %v1680
    %1682 = vmatmul.f32.gmra.mxu0 %v1652
    %v1683 = vpop.f32.mrf.mxu0
    %v1684 = vadd.f32 0.0, %v1683
    %1685 = vmatmul.f32.gmra.mxu0 %v1655
    %v1686 = vpop.f32.mrf.mxu0
    %v1687 = vadd.f32 0.0, %v1686
    %1688 = vmatmul.f32.gmra.mxu0 %v1658
    %v1689 = vpop.f32.mrf.mxu0
    %v1690 = vadd.f32 0.0, %v1689
    %1691 = vmatmul.f32.gmra.mxu0 %v1661
    %v1692 = vpop.f32.mrf.mxu0
    %v1693 = vadd.f32 0.0, %v1692
    %1694 = vdwg.mxu0
    %v1695 = vmax.f32 %v1681, 0.0
    %v1696 = vmax.f32 %v1684, 0.0
    %v1697 = vmax.f32 %v1687, 0.0
    %v1698 = vmax.f32 %v1690, 0.0
    %v1699 = vmax.f32 %v1693, 0.0
    %v1701 = vsel %vm39, %v38, 0
    %1703 = vmatpush.msra.mxu0 0.0
    %1704 = vmatpush.msra.mxu0 0.0
    %1705 = vmatpush.msra.mxu0 0.0
    %1706 = vmatpush.msra.mxu0 0.0
    %1707 = vmatpush.msra.mxu0 0.0
    %1708 = vmatpush.msra.mxu0 0.0
    %1709 = vmatpush.msra.mxu0 0.0
    %1710 = vmatpush.msra.mxu0 0.0
    %1711 = vmatpush.msra.mxu0 0.0
    %1712 = vmatpush.msra.mxu0 0.0
    %1713 = vmatpush.msra.mxu0 0.0
    %1714 = vmatpush.msra.mxu0 %v1699
    %1715 = vmatpush.msra.mxu0 %v1698
    %1716 = vmatpush.msra.mxu0 %v1697
    %1717 = vmatpush.msra.mxu0 %v1696
    %1718 = vmatpush.msra.mxu0 %v1695
    %1719 = vmatmul.f32.gmra.mxu0 %v1701
    %v1720 = vpop.f32.mrf.mxu0
    %v1721 = vadd.f32 0.0, %v1720
    %1722 = vdwg.mxu0
    %1723 = vst [vmem:[#allocation2] sm:$0xff] %v1721
    // Predicated region
    $region10: #{tpu_custom_call.1} parent=1 // pred_check
      _
    $region11: #{tpu_custom_call.1} parent=1 // pred_check_branch
      %1725 = sbr.rel (0) target = $region13
    $region12: #{tpu_custom_call.1} parent=1 // pred_region
      %1727 = vsyncadd [#allocation3], 0
      %s1729 = sshll.u32 [#allocation2], 4
      %s1730 = int_to_ptr.vmem [resolvable:$true] %s1729
      %s1731 = sshll.u32 %s2, 4
      %s1732 = int_to_ptr.hbm [resolvable:$true] %s1731
      %1734 = dma.vmem_to_hbm [thread:$0]  %s1730, 128, %s1732, [#allocation3]
    $region13: #{tpu_custom_call.1} parent=1 // pred_fallthru
      _
    // Predicated region
    $region14: #{tpu_custom_call.1} parent=1 // pred_check
      _
    $region15: #{tpu_custom_call.1} parent=1 // pred_check_branch
      %1736 = sbr.rel (0) target = $region17
    $region16: #{tpu_custom_call.1} parent=1 // pred_region
      %1738 = dma.done [#allocation3], 128
    $region17: #{tpu_custom_call.1} parent=1 // pred_fallthru
      _
    %1739 = vsyncpa [#allocation3], 1

</llo_original>
